<compile_context>
chip_gen: v5e
topology: v5e:2x2
jax: 0.10.0
libtpu: 0.0.40
codegen_flags: <defaults>
</compile_context>

<pallas_src>
import functools

import jax
import jax.numpy as jnp
from jax.experimental import pallas as pl
from jax.experimental.pallas import tpu as pltpu


def _vmem_limit_bytes():
    # v5e/v6e have 128 MiB VMEM per core, v7x only 64 MiB; scoped defaults are 16-32 MiB.
    try:
        cap = pltpu.get_tpu_info().vmem_capacity_bytes
    except Exception:
        cap = 64 * 1024 * 1024
    return int(min(cap * 3 // 4, 100 * 1024 * 1024))


_VMEM_LIMIT = _vmem_limit_bytes()
_ROW_TILE_VMEM_BUDGET = 24 * 1024 * 1024   # per-step folded-K patch + f32 acc + out blocks


# ----------------------------------------------------------------------------
# Pallas kernels
# ----------------------------------------------------------------------------
def conv_stats_kernel(x_ref, w_ref, o_ref, s_ref, q_ref, *, th, wo, cin, cout_pad):
    """Implicit-GEMM 4x4 conv on one NHWC row slab + per-tile BN partial sums.

    x_ref : (th + 3, wo + 3, cin)  bf16 haloed input slab (pad (2,1)/(2,1) already applied)
    w_ref : (4, 4*cin, cout_pad)   bf16 weights, kh-indexed, K = (kw, cin) folded
    o_ref : (th * wo, cout_pad)    bf16 conv output rows for this slab
    s_ref : (8, cout_pad)          f32 per-sublane partial sum       (for BN mean)
    q_ref : (8, cout_pad)          f32 per-sublane partial sum(x^2)  (for BN var)
    """
    rows = th * wo
    # The 4 kw-shifted views are sliced once per grid step (4 sublane-offset relayouts, not
    # 16) and folded into the GEMM K dimension, staying bf16 end to end.
    xcat = jnp.concatenate([x_ref[:, kw:kw + wo, :] for kw in range(4)], axis=-1)

    acc = jnp.zeros((rows, cout_pad), jnp.float32)
    for kh in range(4):
        # kh shifts are pure outer-dim addressing; each dot has K = 4*cin, so the MXU sees
        # 4 well-filled dots per tile instead of 16 shallow (K = cin) ones.
        xs = xcat[kh:kh + th].reshape(rows, 4 * cin)
        acc = acc + jnp.dot(xs, w_ref[kh], preferred_element_type=jnp.float32)

    o_ref[...] = acc.astype(o_ref.dtype)

    # Partial BN statistics: per-sublane sums only (VPU adds, no per-step cross-sublane
    # reduce); the final reduction over (tiles, 8 sublanes) is a tiny XLA op outside.
    acc3 = acc.reshape(rows // 8, 8, cout_pad)
    s_ref[...] = jnp.sum(acc3, axis=0)
    q_ref[...] = jnp.sum(acc3 * acc3, axis=0)


def bn_relu_kernel(x_ref, scale_ref, shift_ref, o_ref):
    """Fused BN affine (precomputed scale/shift) + ReLU; lane-dense (cout_pad wide) I/O."""
    y = x_ref[...].astype(jnp.float32) * scale_ref[...] + shift_ref[...]
    o_ref[...] = jnp.maximum(y, 0.0)


# ----------------------------------------------------------------------------
# XLA-side glue (layout / parameter plumbing)
# ----------------------------------------------------------------------------
def _interp_matrix_x2(size):
    """(2*size, size) align_corners=True bilinear matrix (== nn.UpsamplingBilinear2d x2)."""
    dst = 2 * size
    pos = jnp.arange(dst, dtype=jnp.float32) * ((size - 1) / (dst - 1))
    lo = jnp.floor(pos).astype(jnp.int32)
    hi = jnp.minimum(lo + 1, size - 1)
    frac = pos - lo.astype(jnp.float32)
    cols = jnp.arange(size)[None, :]
    return ((cols == lo[:, None]) * (1.0 - frac[:, None]) +
            (cols == hi[:, None]) * frac[:, None]).astype(jnp.float32)


@functools.partial(jax.jit, static_argnames=("max_rows", "eps"))
def unet_up_forward(x, skip_input, conv_w, gamma, beta, *, max_rows=2048, eps=1e-5):
    """unetUp.forward(x, skip_input).  x: (N, Cin, H, W) NCHW, skip: (N, Cs, 2H, 2W)."""
    n, cin, h, w = x.shape
    cout = conv_w.shape[0]
    ho, wo = 2 * h, 2 * w
    m = n * ho * wo
    assert wo % 8 == 0, "upsampled width must be a multiple of 8"
    cout_pad = ((cout + 127) // 128) * 128            # lane-dense GEMM / BN channel dim

    # --- x2 bilinear upsample (align_corners=True) as two small dense matmuls, with the
    # ZeroPad2d((1,0,1,0)) + conv pad=1 padding folded into the interpolation matrices, so
    # the bf16 haloed activation is produced directly (no gather, no separate pad pass). ---
    wh = jnp.pad(_interp_matrix_x2(h), ((2, 1), (0, 0)))          # (ho + 3, h)
    ww = jnp.pad(_interp_matrix_x2(w), ((2, 1), (0, 0)))          # (wo + 3, w)
    x_nhwc = jnp.transpose(x.astype(jnp.float32), (0, 2, 3, 1))
    up_h = jnp.einsum('oh,nhwc->nowc', wh, x_nhwc)                # (n, ho + 3, w, cin)
    x_pad = jnp.einsum('pw,nowc->nopc', ww, up_h).astype(jnp.bfloat16)   # (n, ho+3, wo+3, cin)
    # TODO(synk): the H interpolation could move inside kernel 1 (read raw rows + halo and
    # interpolate on the VPU) to halve kernel-1 input bytes further.

    # --- row-tile selection: keep the per-step folded-K patch / f32 accumulator / output
    # blocks inside the VMEM budget, and keep >= 2 grid tiles so v7x megacore can shard. ---
    row_bytes = 4 * cin * 2 + cout_pad * 4 + 2 * cout_pad * 2
    rows_cap = min(max_rows, max(wo, _ROW_TILE_VMEM_BUDGET // row_bytes))
    th = ho
    while th * wo > rows_cap and th % 2 == 0:
        th //= 2
    nt = ho // th
    if n * nt < 2 and th % 2 == 0:
        th //= 2
        nt = ho // th
    # TODO(synk): layers where wo alone exceeds the row budget need a W tile axis (3-column
    # halo) so th does not collapse to 1; not needed for this network's shapes.
    thp, wp = th + 3, wo + 3
    if nt == 1:
        x_slabs = x_pad[:, None]                       # pure reshape, no copy
    else:
        # TODO(synk): an element-offset (pl.Element) H window or a pl.ANY + manual-DMA
        # input would avoid materializing this haloed copy when nt > 1.
        x_slabs = jnp.stack([x_pad[:, t * th:t * th + thp] for t in range(nt)], axis=1)

    # Weights: (cout, cin, 4, 4) -> (4 [kh], 4*cin [kw-major], cout_pad), bf16, VMEM-resident.
    w_r = jnp.transpose(conv_w.astype(jnp.float32), (2, 3, 1, 0)).reshape(4, 4 * cin, cout)
    w_p = jnp.pad(w_r, ((0, 0), (0, 0), (0, cout_pad - cout))).astype(jnp.bfloat16)
    # TODO(synk): for cin >= 512 on v7x (64 MiB VMEM) single-buffer the weights and add a K
    # grid axis over cin chunks with an f32 accumulator scratch.

    rows = th * wo
    cost = pl.CostEstimate(
        flops=2 * m * 16 * cin * cout_pad,
        transcendentals=0,
        bytes_accessed=int(2 * x_slabs.size + 2 * w_p.size + 2 * m * cout_pad
                           + 8 * n * nt * 8 * cout_pad),
    )

    # --- kernel 1: implicit-GEMM conv + per-tile BN partial statistics ---
    conv_out, part_s, part_q = pl.pallas_call(
        functools.partial(conv_stats_kernel, th=th, wo=wo, cin=cin, cout_pad=cout_pad),
        out_shape=(
            jax.ShapeDtypeStruct((m, cout_pad), jnp.bfloat16),
            jax.ShapeDtypeStruct((n, nt, 8, cout_pad), jnp.float32),
            jax.ShapeDtypeStruct((n, nt, 8, cout_pad), jnp.float32),
        ),
        grid=(n, nt),
        in_specs=[
            pl.BlockSpec((None, None, thp, wp, cin), lambda i, t: (i, t, 0, 0, 0)),
            pl.BlockSpec((4, 4 * cin, cout_pad), lambda i, t: (0, 0, 0)),
        ],
        out_specs=(
            pl.BlockSpec((rows, cout_pad), lambda i, t: (i * nt + t, 0)),
            pl.BlockSpec((None, None, 8, cout_pad), lambda i, t: (i, t, 0, 0)),
            pl.BlockSpec((None, None, 8, cout_pad), lambda i, t: (i, t, 0, 0)),
        ),
        compiler_params=pltpu.CompilerParams(
            dimension_semantics=("parallel", "parallel"),   # no cross-step state
            vmem_limit_bytes=_VMEM_LIMIT,
        ),
        cost_estimate=cost,
    )(x_slabs, w_p)

    # --- BN batch statistics (biased variance, like nn.BatchNorm2d training forward) ---
    ch_sum = jnp.sum(part_s, axis=(0, 1, 2))
    ch_sq = jnp.sum(part_q, axis=(0, 1, 2))
    mean = ch_sum / m
    # TODO(synk): E[x^2]-E[x]^2 can cancel when |mean| >> std; a Welford / two-pass variant
    # would track PyTorch more closely in that regime.  Clamp keeps rsqrt well defined.
    var = jnp.maximum(ch_sq / m - mean * mean, 0.0)
    inv_std = jax.lax.rsqrt(var + eps)
    gamma_p = jnp.pad(gamma.astype(jnp.float32), (0, cout_pad - cout))
    beta_p = jnp.pad(beta.astype(jnp.float32), (0, cout_pad - cout))
    scale = (gamma_p * inv_std)[None, :]                       # (1, cout_pad)
    shift = (beta_p - mean * gamma_p * inv_std)[None, :]       # (1, cout_pad)

    # --- kernel 2: fused BN affine + ReLU on lane-dense rows (bf16 in, full-width f32 out).
    # The skip tensor never enters a kernel; it is concatenated once, in NCHW, below. ---
    tm2 = min(4096, m)
    while m % tm2 != 0:                                        # m is a multiple of 8
        tm2 -= 8
    bn_rows = pl.pallas_call(
        bn_relu_kernel,
        out_shape=jax.ShapeDtypeStruct((m, cout_pad), jnp.float32),
        grid=(m // tm2,),
        in_specs=[
            pl.BlockSpec((tm2, cout_pad), lambda i: (i, 0)),
            pl.BlockSpec((1, cout_pad), lambda i: (0, 0)),
            pl.BlockSpec((1, cout_pad), lambda i: (0, 0)),
        ],
        out_specs=pl.BlockSpec((tm2, cout_pad), lambda i: (i, 0)),
        compiler_params=pltpu.CompilerParams(
            dimension_semantics=("parallel",),
            vmem_limit_bytes=_VMEM_LIMIT,
        ),
    )(conv_out, scale, shift)

    # --- PyTorch-interface glue: drop lane padding, NHWC->NCHW, single concat with skip ---
    y = bn_rows[:, :cout].reshape(n, ho, wo, cout)
    y_nchw = jnp.transpose(y, (0, 3, 1, 2))
    # TODO(synk): BatchNorm running-stat (momentum=0.8) updates are training bookkeeping,
    # not part of this forward.
    return jnp.concatenate([y_nchw, skip_input.astype(y_nchw.dtype)], axis=1)


# ----------------------------------------------------------------------------
# Example run
# ----------------------------------------------------------------------------
if __name__ == "__main__":
    key = jax.random.PRNGKey(0)
    k_x, k_skip, k_w = jax.random.split(key, 3)

    n, in_size, out_size = 2, 4, 8
    h = w = 8                       # upsampled spatial = 16 x 16
    skip_ch = 8

    x = jax.random.normal(k_x, (n, in_size, h, w), dtype=jnp.float32)
    skip = jax.random.normal(k_skip, (n, skip_ch, 2 * h, 2 * w), dtype=jnp.float32)

    # Deterministic parameter init (shapes from nn.Conv2d / nn.BatchNorm2d in __init__).
    conv_w = 0.1 * jax.random.normal(k_w, (out_size, in_size, 4, 4), dtype=jnp.float32)
    gamma = jnp.ones((out_size,), dtype=jnp.float32)    # BatchNorm2d default weight
    beta = jnp.zeros((out_size,), dtype=jnp.float32)    # BatchNorm2d default bias

    out = unet_up_forward(x, skip, conv_w, gamma, beta)
    jax.block_until_ready(out)

    assert out.shape == (n, out_size + skip_ch, 2 * h, 2 * w), out.shape
    print("KERNEL_OK")
</pallas_src>

<mosaic_0001>
module attributes {stable_mosaic.version = 11 : i64} {
  func.func @conv_stats_kernel(%arg0: i32, %arg1: i32, %arg2: memref<1x1x19x19x4xbf16, #tpu.memory_space<vmem>>, %arg3: memref<4x16x128xbf16, #tpu.memory_space<vmem>>, %arg4: memref<256x128xbf16, #tpu.memory_space<vmem>>, %arg5: memref<1x1x8x128xf32, #tpu.memory_space<vmem>>, %arg6: memref<1x1x8x128xf32, #tpu.memory_space<vmem>>) attributes {dimension_semantics = [#tpu.dimension_semantics<parallel>, #tpu.dimension_semantics<parallel>], iteration_bounds = array<i64: 2, 1>, scalar_prefetch = 0 : i64, scratch_operands = 0 : i64, tpu.core_type = #tpu.core_type<tc>, window_params = [{transform_indices = @transform_0, window_bounds = array<i64: 1, 1, 19, 19, 4>}, {pipeline_mode = #tpu.pipeline_mode<synchronous>, transform_indices = @transform_1, window_bounds = array<i64: 4, 16, 128>}, {transform_indices = @transform_2, window_bounds = array<i64: 256, 128>}, {transform_indices = @transform_3, window_bounds = array<i64: 1, 1, 8, 128>}, {transform_indices = @transform_4, window_bounds = array<i64: 1, 1, 8, 128>}]} {
    %c0 = arith.constant 0 : index
    %c0_0 = arith.constant 0 : index
    %c0_1 = arith.constant 0 : index
    %c0_2 = arith.constant 0 : index
    %c0_3 = arith.constant 0 : index
    %0 = vector.load %arg2[%c0, %c0_0, %c0_1, %c0_2, %c0_3] : memref<1x1x19x19x4xbf16, #tpu.memory_space<vmem>>, vector<1x1x19x16x4xbf16>
    %1 = vector.shape_cast %0 : vector<1x1x19x16x4xbf16> to vector<19x16x4xbf16>
    %c0_4 = arith.constant 0 : index
    %c0_5 = arith.constant 0 : index
    %c0_6 = arith.constant 0 : index
    %c1 = arith.constant 1 : index
    %c0_7 = arith.constant 0 : index
    %2 = vector.load %arg2[%c0_4, %c0_5, %c0_6, %c1, %c0_7] : memref<1x1x19x19x4xbf16, #tpu.memory_space<vmem>>, vector<1x1x19x16x4xbf16>
    %3 = vector.shape_cast %2 : vector<1x1x19x16x4xbf16> to vector<19x16x4xbf16>
    %c0_8 = arith.constant 0 : index
    %c0_9 = arith.constant 0 : index
    %c0_10 = arith.constant 0 : index
    %c2 = arith.constant 2 : index
    %c0_11 = arith.constant 0 : index
    %4 = vector.load %arg2[%c0_8, %c0_9, %c0_10, %c2, %c0_11] : memref<1x1x19x19x4xbf16, #tpu.memory_space<vmem>>, vector<1x1x19x16x4xbf16>
    %5 = vector.shape_cast %4 : vector<1x1x19x16x4xbf16> to vector<19x16x4xbf16>
    %c0_12 = arith.constant 0 : index
    %c0_13 = arith.constant 0 : index
    %c0_14 = arith.constant 0 : index
    %c3 = arith.constant 3 : index
    %c0_15 = arith.constant 0 : index
    %6 = vector.load %arg2[%c0_12, %c0_13, %c0_14, %c3, %c0_15] : memref<1x1x19x19x4xbf16, #tpu.memory_space<vmem>>, vector<1x1x19x16x4xbf16>
    %7 = vector.shape_cast %6 : vector<1x1x19x16x4xbf16> to vector<19x16x4xbf16>
    %8 = tpu.concatenate %1, %3, %5, %7 in 2 : vector<19x16x4xbf16>, vector<19x16x4xbf16>, vector<19x16x4xbf16>, vector<19x16x4xbf16> -> vector<19x16x16xbf16>
    %cst = arith.constant 0.000000e+00 : f32
    %9 = vector.broadcast %cst : f32 to vector<256x128xf32>
    %10 = vector.extract_strided_slice %8 {offsets = [0, 0, 0], sizes = [16, 16, 16], strides = [1, 1, 1]} : vector<19x16x16xbf16> to vector<16x16x16xbf16>
    %11 = vector.shape_cast %10 : vector<16x16x16xbf16> to vector<256x16xbf16>
    %c0_16 = arith.constant 0 : index
    %c0_17 = arith.constant 0 : index
    %c0_18 = arith.constant 0 : index
    %12 = vector.load %arg3[%c0_16, %c0_17, %c0_18] : memref<4x16x128xbf16, #tpu.memory_space<vmem>>, vector<1x16x128xbf16>
    %13 = vector.shape_cast %12 : vector<1x16x128xbf16> to vector<16x128xbf16>
    %cst_19 = arith.constant dense<0.000000e+00> : vector<256x128xf32>
    %14 = tpu.matmul %11, %13, %cst_19 {dimension_numbers = #tpu.dot_dimension_numbers<[1], [0], [0], [1], [0, 0, 1, 1], [], []>} : vector<256x16xbf16>, vector<16x128xbf16>, vector<256x128xf32> -> vector<256x128xf32>
    %15 = arith.addf %9, %14 : vector<256x128xf32>
    %16 = vector.extract_strided_slice %8 {offsets = [1, 0, 0], sizes = [16, 16, 16], strides = [1, 1, 1]} : vector<19x16x16xbf16> to vector<16x16x16xbf16>
    %17 = vector.shape_cast %16 : vector<16x16x16xbf16> to vector<256x16xbf16>
    %c1_20 = arith.constant 1 : index
    %c0_21 = arith.constant 0 : index
    %c0_22 = arith.constant 0 : index
    %18 = vector.load %arg3[%c1_20, %c0_21, %c0_22] : memref<4x16x128xbf16, #tpu.memory_space<vmem>>, vector<1x16x128xbf16>
    %19 = vector.shape_cast %18 : vector<1x16x128xbf16> to vector<16x128xbf16>
    %cst_23 = arith.constant dense<0.000000e+00> : vector<256x128xf32>
    %20 = tpu.matmul %17, %19, %cst_23 {dimension_numbers = #tpu.dot_dimension_numbers<[1], [0], [0], [1], [0, 0, 1, 1], [], []>} : vector<256x16xbf16>, vector<16x128xbf16>, vector<256x128xf32> -> vector<256x128xf32>
    %21 = arith.addf %15, %20 : vector<256x128xf32>
    %22 = vector.extract_strided_slice %8 {offsets = [2, 0, 0], sizes = [16, 16, 16], strides = [1, 1, 1]} : vector<19x16x16xbf16> to vector<16x16x16xbf16>
    %23 = vector.shape_cast %22 : vector<16x16x16xbf16> to vector<256x16xbf16>
    %c2_24 = arith.constant 2 : index
    %c0_25 = arith.constant 0 : index
    %c0_26 = arith.constant 0 : index
    %24 = vector.load %arg3[%c2_24, %c0_25, %c0_26] : memref<4x16x128xbf16, #tpu.memory_space<vmem>>, vector<1x16x128xbf16>
    %25 = vector.shape_cast %24 : vector<1x16x128xbf16> to vector<16x128xbf16>
    %cst_27 = arith.constant dense<0.000000e+00> : vector<256x128xf32>
    %26 = tpu.matmul %23, %25, %cst_27 {dimension_numbers = #tpu.dot_dimension_numbers<[1], [0], [0], [1], [0, 0, 1, 1], [], []>} : vector<256x16xbf16>, vector<16x128xbf16>, vector<256x128xf32> -> vector<256x128xf32>
    %27 = arith.addf %21, %26 : vector<256x128xf32>
    %28 = vector.extract_strided_slice %8 {offsets = [3, 0, 0], sizes = [16, 16, 16], strides = [1, 1, 1]} : vector<19x16x16xbf16> to vector<16x16x16xbf16>
    %29 = vector.shape_cast %28 : vector<16x16x16xbf16> to vector<256x16xbf16>
    %c3_28 = arith.constant 3 : index
    %c0_29 = arith.constant 0 : index
    %c0_30 = arith.constant 0 : index
    %30 = vector.load %arg3[%c3_28, %c0_29, %c0_30] : memref<4x16x128xbf16, #tpu.memory_space<vmem>>, vector<1x16x128xbf16>
    %31 = vector.shape_cast %30 : vector<1x16x128xbf16> to vector<16x128xbf16>
    %cst_31 = arith.constant dense<0.000000e+00> : vector<256x128xf32>
    %32 = tpu.matmul %29, %31, %cst_31 {dimension_numbers = #tpu.dot_dimension_numbers<[1], [0], [0], [1], [0, 0, 1, 1], [], []>} : vector<256x16xbf16>, vector<16x128xbf16>, vector<256x128xf32> -> vector<256x128xf32>
    %33 = arith.addf %27, %32 : vector<256x128xf32>
    %34 = arith.truncf %33 : vector<256x128xf32> to vector<256x128xbf16>
    %c0_32 = arith.constant 0 : index
    %c0_33 = arith.constant 0 : index
    %35 = vector.load %arg4[%c0_32, %c0_33] : memref<256x128xbf16, #tpu.memory_space<vmem>>, vector<256x128xbf16>
    tpu.vector_store %arg4[%c0_32, %c0_33], %34 {strides = array<i32>} : memref<256x128xbf16, #tpu.memory_space<vmem>>, vector<256x128xbf16>,
    %36 = vector.shape_cast %33 : vector<256x128xf32> to vector<32x8x128xf32>
    %cst_34 = arith.constant dense<0.000000e+00> : vector<8x128xf32>
    %37 = vector.multi_reduction <add>, %36, %cst_34 [0] : vector<32x8x128xf32> to vector<8x128xf32>
    %c0_35 = arith.constant 0 : index
    %c0_36 = arith.constant 0 : index
    %c0_37 = arith.constant 0 : index
    %c0_38 = arith.constant 0 : index
    %38 = vector.load %arg5[%c0_35, %c0_36, %c0_37, %c0_38] : memref<1x1x8x128xf32, #tpu.memory_space<vmem>>, vector<1x1x8x128xf32>
    %39 = vector.shape_cast %38 : vector<1x1x8x128xf32> to vector<8x128xf32>
    %40 = vector.shape_cast %37 : vector<8x128xf32> to vector<1x1x8x128xf32>
    tpu.vector_store %arg5[%c0_35, %c0_36, %c0_37, %c0_38], %40 {strides = array<i32>} : memref<1x1x8x128xf32, #tpu.memory_space<vmem>>, vector<1x1x8x128xf32>,
    %41 = arith.mulf %36, %36 : vector<32x8x128xf32>
    %cst_39 = arith.constant dense<0.000000e+00> : vector<8x128xf32>
    %42 = vector.multi_reduction <add>, %41, %cst_39 [0] : vector<32x8x128xf32> to vector<8x128xf32>
    %c0_40 = arith.constant 0 : index
    %c0_41 = arith.constant 0 : index
    %c0_42 = arith.constant 0 : index
    %c0_43 = arith.constant 0 : index
    %43 = vector.load %arg6[%c0_40, %c0_41, %c0_42, %c0_43] : memref<1x1x8x128xf32, #tpu.memory_space<vmem>>, vector<1x1x8x128xf32>
    %44 = vector.shape_cast %43 : vector<1x1x8x128xf32> to vector<8x128xf32>
    %45 = vector.shape_cast %42 : vector<8x128xf32> to vector<1x1x8x128xf32>
    tpu.vector_store %arg6[%c0_40, %c0_41, %c0_42, %c0_43], %45 {strides = array<i32>} : memref<1x1x8x128xf32, #tpu.memory_space<vmem>>, vector<1x1x8x128xf32>,
    return
  }
  func.func @transform_0(%arg0: i32, %arg1: i32) -> (i32, i32, i32, i32, i32) {
    %c0_i32 = arith.constant 0 : i32
    %c0_i32_0 = arith.constant 0 : i32
    %c0_i32_1 = arith.constant 0 : i32
    %c0_i32_2 = arith.constant 0 : i32
    return %arg0, %arg1, %c0_i32, %c0_i32_0, %c0_i32_1 : i32, i32, i32, i32, i32
  }
  func.func @transform_1(%arg0: i32, %arg1: i32) -> (i32, i32, i32) {
    %c0_i32 = arith.constant 0 : i32
    %c0_i32_0 = arith.constant 0 : i32
    %c0_i32_1 = arith.constant 0 : i32
    %c0_i32_2 = arith.constant 0 : i32
    return %c0_i32, %c0_i32_0, %c0_i32_1 : i32, i32, i32
  }
  func.func @transform_2(%arg0: i32, %arg1: i32) -> (i32, i32) {
    %c1_i32 = arith.constant 1 : i32
    %0 = arith.muli %arg0, %c1_i32 : i32
    %1 = arith.addi %0, %arg1 : i32
    %c0_i32 = arith.constant 0 : i32
    %c0_i32_0 = arith.constant 0 : i32
    return %1, %c0_i32 : i32, i32
  }
  func.func @transform_3(%arg0: i32, %arg1: i32) -> (i32, i32, i32, i32) {
    %c0_i32 = arith.constant 0 : i32
    %c0_i32_0 = arith.constant 0 : i32
    %c0_i32_1 = arith.constant 0 : i32
    return %arg0, %arg1, %c0_i32, %c0_i32_0 : i32, i32, i32, i32
  }
  func.func @transform_4(%arg0: i32, %arg1: i32) -> (i32, i32, i32, i32) {
    %c0_i32 = arith.constant 0 : i32
    %c0_i32_0 = arith.constant 0 : i32
    %c0_i32_1 = arith.constant 0 : i32
    return %arg0, %arg1, %c0_i32, %c0_i32_0 : i32, i32, i32, i32
  }
}

module attributes {stable_mosaic.version = 11 : i64} {
  func.func @bn_relu_kernel(%arg0: i32, %arg1: memref<512x128xbf16, #tpu.memory_space<vmem>>, %arg2: memref<1x128xf32, #tpu.memory_space<vmem>>, %arg3: memref<1x128xf32, #tpu.memory_space<vmem>>, %arg4: memref<512x128xf32, #tpu.memory_space<vmem>>) attributes {dimension_semantics = [#tpu.dimension_semantics<parallel>], iteration_bounds = array<i64: 1>, scalar_prefetch = 0 : i64, scratch_operands = 0 : i64, tpu.core_type = #tpu.core_type<tc>, window_params = [{transform_indices = @transform_0, window_bounds = array<i64: 512, 128>}, {pipeline_mode = #tpu.pipeline_mode<synchronous>, transform_indices = @transform_1, window_bounds = array<i64: 1, 128>}, {pipeline_mode = #tpu.pipeline_mode<synchronous>, transform_indices = @transform_2, window_bounds = array<i64: 1, 128>}, {transform_indices = @transform_3, window_bounds = array<i64: 512, 128>}]} {
    %c0 = arith.constant 0 : index
    %c0_0 = arith.constant 0 : index
    %0 = vector.load %arg1[%c0, %c0_0] : memref<512x128xbf16, #tpu.memory_space<vmem>>, vector<512x128xbf16>
    %1 = arith.extf %0 : vector<512x128xbf16> to vector<512x128xf32>
    %c0_1 = arith.constant 0 : index
    %c0_2 = arith.constant 0 : index
    %2 = vector.load %arg2[%c0_1, %c0_2] : memref<1x128xf32, #tpu.memory_space<vmem>>, vector<1x128xf32>
    %3 = vector.broadcast %2 : vector<1x128xf32> to vector<512x128xf32>
    %4 = arith.mulf %1, %3 : vector<512x128xf32>
    %c0_3 = arith.constant 0 : index
    %c0_4 = arith.constant 0 : index
    %5 = vector.load %arg3[%c0_3, %c0_4] : memref<1x128xf32, #tpu.memory_space<vmem>>, vector<1x128xf32>
    %6 = vector.broadcast %5 : vector<1x128xf32> to vector<512x128xf32>
    %7 = arith.addf %4, %6 : vector<512x128xf32>
    %cst = arith.constant 0.000000e+00 : f32
    %8 = vector.broadcast %cst : f32 to vector<512x128xf32>
    %9 = arith.maximumf %7, %8 : vector<512x128xf32>
    %c0_5 = arith.constant 0 : index
    %c0_6 = arith.constant 0 : index
    %10 = vector.load %arg4[%c0_5, %c0_6] : memref<512x128xf32, #tpu.memory_space<vmem>>, vector<512x128xf32>
    tpu.vector_store %arg4[%c0_5, %c0_6], %9 {strides = array<i32>} : memref<512x128xf32, #tpu.memory_space<vmem>>, vector<512x128xf32>,
    return
  }
  func.func @transform_0(%arg0: i32) -> (i32, i32) {
    %c0_i32 = arith.constant 0 : i32
    %c0_i32_0 = arith.constant 0 : i32
    return %arg0, %c0_i32 : i32, i32
  }
  func.func @transform_1(%arg0: i32) -> (i32, i32) {
    %c0_i32 = arith.constant 0 : i32
    %c0_i32_0 = arith.constant 0 : i32
    %c0_i32_1 = arith.constant 0 : i32
    return %c0_i32, %c0_i32_0 : i32, i32
  }
  func.func @transform_2(%arg0: i32) -> (i32, i32) {
    %c0_i32 = arith.constant 0 : i32
    %c0_i32_0 = arith.constant 0 : i32
    %c0_i32_1 = arith.constant 0 : i32
    return %c0_i32, %c0_i32_0 : i32, i32
  }
  func.func @transform_3(%arg0: i32) -> (i32, i32) {
    %c0_i32 = arith.constant 0 : i32
    %c0_i32_0 = arith.constant 0 : i32
    return %arg0, %c0_i32 : i32, i32
  }
}

</mosaic_0001>

<llo_original>
// kernel: unet_up_forward.3
$region0: #{unet_up_forward.3}
  #allocation0 [shape = 'u32[]', space=smem, size = 0x4, offset = 0x4, fixed_abs, tag = 'smem constant byte address 0x4 - core index']
  #allocation1 [shape = 'u32[72,128]{1,0:T(1,128)}', space=vmem, size = 0x9000, scoped, tag = 'internal scratch']
  %s0 = inlined_call_operand.vmem [shape: bf16[512,128], index: 0, kind: input, shape index: {}]
  %s1 = inlined_call_operand.vmem [shape: f32[1,128], index: 1, kind: input, shape index: {}]
  %s2 = inlined_call_operand.vmem [shape: f32[1,128], index: 2, kind: input, shape index: {}]
  %s3 = inlined_call_operand.vmem [shape: f32[512,128], index: 3, kind: output, shape index: {}]
  %s4 = sld [smem:[#allocation0]]
  $region22: #{unet_up_forward.3} parent=0
    _
  %s6 = ssub.s32 1, %s4
  %s7 = scalar_select 0, %s6, %s4
  // Predicated region
  $region2: #{unet_up_forward.3} parent=0 // pred_check
    _
  $region3: #{unet_up_forward.3} parent=0 // pred_check_branch
    %9 = sbr.rel (0) target = $region5
  $region4: #{unet_up_forward.3} parent=0 // pred_region
    _
  $region5: #{unet_up_forward.3} parent=0 // pred_fallthru
    _
  // Predicated region
  $region6: #{unet_up_forward.3} parent=0 // pred_check
    _
  $region7: #{unet_up_forward.3} parent=0 // pred_check_branch
    %11 = sbr.rel (0) target = $region9
  $region8: #{unet_up_forward.3} parent=0 // pred_region
    _
  $region9: #{unet_up_forward.3} parent=0 // pred_fallthru
    _
  // Predicated region
  $region10: #{unet_up_forward.3} parent=0 // pred_check
    _
  $region11: #{unet_up_forward.3} parent=0 // pred_check_branch
    %13 = sbr.rel (0) target = $region13
  $region12: #{unet_up_forward.3} parent=0 // pred_region
    _
  $region13: #{unet_up_forward.3} parent=0 // pred_fallthru
    _
  %v14 = vld [vmem:[%s0] sm:$0xf]
  %v15 = vld [vmem:[%s0 + $0x4] sm:$0xf]
  %v16 = vld [vmem:[%s0 + $0x8] sm:$0xf]
  %v17 = vld [vmem:[%s0 + $0xc] sm:$0xf]
  %v18 = vld [vmem:[%s0 + $0x10] sm:$0xf]
  %v19 = vld [vmem:[%s0 + $0x14] sm:$0xf]
  %v20 = vld [vmem:[%s0 + $0x18] sm:$0xf]
  %v21 = vld [vmem:[%s0 + $0x1c] sm:$0xf]
  %v22 = vld [vmem:[%s0 + $0x20] sm:$0xf]
  %v23 = vld [vmem:[%s0 + $0x24] sm:$0xf]
  %v24 = vld [vmem:[%s0 + $0x28] sm:$0xf]
  %v25 = vld [vmem:[%s0 + $0x2c] sm:$0xf]
  %v26 = vld [vmem:[%s0 + $0x30] sm:$0xf]
  %v27 = vld [vmem:[%s0 + $0x34] sm:$0xf]
  %v28 = vld [vmem:[%s0 + $0x38] sm:$0xf]
  %v29 = vld [vmem:[%s0 + $0x3c] sm:$0xf]
  %v30 = vld [vmem:[%s0 + $0x40] sm:$0xf]
  %v31 = vld [vmem:[%s0 + $0x44] sm:$0xf]
  %v32 = vld [vmem:[%s0 + $0x48] sm:$0xf]
  %v33 = vld [vmem:[%s0 + $0x4c] sm:$0xf]
  %v34 = vld [vmem:[%s0 + $0x50] sm:$0xf]
  %v35 = vld [vmem:[%s0 + $0x54] sm:$0xf]
  %v36 = vld [vmem:[%s0 + $0x58] sm:$0xf]
  %v37 = vld [vmem:[%s0 + $0x5c] sm:$0xf]
  %v38 = vld [vmem:[%s0 + $0x60] sm:$0xf]
  %v39 = vld [vmem:[%s0 + $0x64] sm:$0xf]
  %v40 = vld [vmem:[%s0 + $0x68] sm:$0xf]
  %v41 = vld [vmem:[%s0 + $0x6c] sm:$0xf]
  %v42 = vld [vmem:[%s0 + $0x70] sm:$0xf]
  %v43 = vld [vmem:[%s0 + $0x74] sm:$0xf]
  %v44 = vld [vmem:[%s0 + $0x78] sm:$0xf]
  %v45 = vld [vmem:[%s0 + $0x7c] sm:$0xf]
  %v46 = vld [vmem:[%s0 + $0x80] sm:$0xf]
  %v47 = vld [vmem:[%s0 + $0x84] sm:$0xf]
  %v48 = vld [vmem:[%s0 + $0x88] sm:$0xf]
  %v49 = vld [vmem:[%s0 + $0x8c] sm:$0xf]
  %v50 = vld [vmem:[%s0 + $0x90] sm:$0xf]
  %v51 = vld [vmem:[%s0 + $0x94] sm:$0xf]
  %v52 = vld [vmem:[%s0 + $0x98] sm:$0xf]
  %v53 = vld [vmem:[%s0 + $0x9c] sm:$0xf]
  %v54 = vld [vmem:[%s0 + $0xa0] sm:$0xf]
  %v55 = vld [vmem:[%s0 + $0xa4] sm:$0xf]
  %v56 = vld [vmem:[%s0 + $0xa8] sm:$0xf]
  %v57 = vld [vmem:[%s0 + $0xac] sm:$0xf]
  %v58 = vld [vmem:[%s0 + $0xb0] sm:$0xf]
  %v59 = vld [vmem:[%s0 + $0xb4] sm:$0xf]
  %v60 = vld [vmem:[%s0 + $0xb8] sm:$0xf]
  %v61 = vld [vmem:[%s0 + $0xbc] sm:$0xf]
  %v62 = vld [vmem:[%s0 + $0xc0] sm:$0xf]
  %v63 = vld [vmem:[%s0 + $0xc4] sm:$0xf]
  %v64 = vld [vmem:[%s0 + $0xc8] sm:$0xf]
  %v65 = vld [vmem:[%s0 + $0xcc] sm:$0xf]
  %v66 = vld [vmem:[%s0 + $0xd0] sm:$0xf]
  %v67 = vld [vmem:[%s0 + $0xd4] sm:$0xf]
  %v68 = vld [vmem:[%s0 + $0xd8] sm:$0xf]
  %v69 = vld [vmem:[%s0 + $0xdc] sm:$0xf]
  %v70 = vld [vmem:[%s0 + $0xe0] sm:$0xf]
  %v71 = vld [vmem:[%s0 + $0xe4] sm:$0xf]
  %v72 = vld [vmem:[%s0 + $0xe8] sm:$0xf]
  %v73 = vld [vmem:[%s0 + $0xec] sm:$0xf]
  %v74 = vld [vmem:[%s0 + $0xf0] sm:$0xf]
  %v75 = vld [vmem:[%s0 + $0xf4] sm:$0xf]
  %v76 = vld [vmem:[%s0 + $0xf8] sm:$0xf]
  %v77 = vld [vmem:[%s0 + $0xfc] sm:$0xf]
  %v78 = vunpack.c.l.bf16 %v14
  %v79 = vunpack.c.l.bf16 %v15
  %v80 = vunpack.c.l.bf16 %v16
  %v81 = vunpack.c.l.bf16 %v17
  %v82 = vunpack.c.l.bf16 %v18
  %v83 = vunpack.c.l.bf16 %v19
  %v84 = vunpack.c.l.bf16 %v20
  %v85 = vunpack.c.l.bf16 %v21
  %v86 = vunpack.c.l.bf16 %v22
  %v87 = vunpack.c.l.bf16 %v23
  %v88 = vunpack.c.l.bf16 %v24
  %v89 = vunpack.c.l.bf16 %v25
  %v90 = vunpack.c.l.bf16 %v26
  %v91 = vunpack.c.l.bf16 %v27
  %v92 = vunpack.c.l.bf16 %v28
  %v93 = vunpack.c.l.bf16 %v29
  %v94 = vunpack.c.l.bf16 %v30
  %v95 = vunpack.c.l.bf16 %v31
  %v96 = vunpack.c.l.bf16 %v32
  %v97 = vunpack.c.l.bf16 %v33
  %v98 = vunpack.c.l.bf16 %v34
  %v99 = vunpack.c.l.bf16 %v35
  %v100 = vunpack.c.l.bf16 %v36
  %v101 = vunpack.c.l.bf16 %v37
  %v102 = vunpack.c.l.bf16 %v38
  %v103 = vunpack.c.l.bf16 %v39
  %v104 = vunpack.c.l.bf16 %v40
  %v105 = vunpack.c.l.bf16 %v41
  %v106 = vunpack.c.l.bf16 %v42
  %v107 = vunpack.c.l.bf16 %v43
  %v108 = vunpack.c.l.bf16 %v44
  %v109 = vunpack.c.l.bf16 %v45
  %v110 = vunpack.c.l.bf16 %v46
  %v111 = vunpack.c.l.bf16 %v47
  %v112 = vunpack.c.l.bf16 %v48
  %v113 = vunpack.c.l.bf16 %v49
  %v114 = vunpack.c.l.bf16 %v50
  %v115 = vunpack.c.l.bf16 %v51
  %v116 = vunpack.c.l.bf16 %v52
  %v117 = vunpack.c.l.bf16 %v53
  %v118 = vunpack.c.l.bf16 %v54
  %v119 = vunpack.c.l.bf16 %v55
  %v120 = vunpack.c.l.bf16 %v56
  %v121 = vunpack.c.l.bf16 %v57
  %v122 = vunpack.c.l.bf16 %v58
  %v123 = vunpack.c.l.bf16 %v59
  %v124 = vunpack.c.l.bf16 %v60
  %v125 = vunpack.c.l.bf16 %v61
  %v126 = vunpack.c.l.bf16 %v62
  %v127 = vunpack.c.l.bf16 %v63
  %v128 = vunpack.c.l.bf16 %v64
  %v129 = vunpack.c.l.bf16 %v65
  %v130 = vunpack.c.l.bf16 %v66
  %v131 = vunpack.c.l.bf16 %v67
  %v132 = vunpack.c.l.bf16 %v68
  %v133 = vunpack.c.l.bf16 %v69
  %v134 = vunpack.c.l.bf16 %v70
  %v135 = vunpack.c.l.bf16 %v71
  %v136 = vunpack.c.l.bf16 %v72
  %v137 = vunpack.c.l.bf16 %v73
  %v138 = vunpack.c.l.bf16 %v74
  %v139 = vunpack.c.l.bf16 %v75
  %v140 = vunpack.c.l.bf16 %v76
  %v141 = vunpack.c.l.bf16 %v77
  %v142 = vld [vmem:[%s1] sm:$0x1]
  %v144 = vperm.slane %v142, 0
  %v146 = vmul.f32 %v78, %v144
  %v147 = vmul.f32 %v79, %v144
  %v148 = vmul.f32 %v80, %v144
  %v149 = vmul.f32 %v81, %v144
  %v150 = vmul.f32 %v82, %v144
  %v151 = vmul.f32 %v83, %v144
  %v152 = vmul.f32 %v84, %v144
  %v153 = vmul.f32 %v85, %v144
  %v154 = vmul.f32 %v86, %v144
  %v155 = vmul.f32 %v87, %v144
  %v156 = vmul.f32 %v88, %v144
  %v157 = vmul.f32 %v89, %v144
  %v158 = vmul.f32 %v90, %v144
  %v159 = vmul.f32 %v91, %v144
  %v160 = vmul.f32 %v92, %v144
  %v161 = vmul.f32 %v93, %v144
  %v162 = vmul.f32 %v94, %v144
  %v163 = vmul.f32 %v95, %v144
  %v164 = vmul.f32 %v96, %v144
  %v165 = vmul.f32 %v97, %v144
  %v166 = vmul.f32 %v98, %v144
  %v167 = vmul.f32 %v99, %v144
  %v168 = vmul.f32 %v100, %v144
  %v169 = vmul.f32 %v101, %v144
  %v170 = vmul.f32 %v102, %v144
  %v171 = vmul.f32 %v103, %v144
  %v172 = vmul.f32 %v104, %v144
  %v173 = vmul.f32 %v105, %v144
  %v174 = vmul.f32 %v106, %v144
  %v175 = vmul.f32 %v107, %v144
  %v176 = vmul.f32 %v108, %v144
  %v177 = vmul.f32 %v109, %v144
  %v178 = vmul.f32 %v110, %v144
  %v179 = vmul.f32 %v111, %v144
  %v180 = vmul.f32 %v112, %v144
  %v181 = vmul.f32 %v113, %v144
  %v182 = vmul.f32 %v114, %v144
  %v183 = vmul.f32 %v115, %v144
  %v184 = vmul.f32 %v116, %v144
  %v185 = vmul.f32 %v117, %v144
  %v186 = vmul.f32 %v118, %v144
  %v187 = vmul.f32 %v119, %v144
  %v188 = vmul.f32 %v120, %v144
  %v189 = vmul.f32 %v121, %v144
  %v190 = vmul.f32 %v122, %v144
  %v191 = vmul.f32 %v123, %v144
  %v192 = vmul.f32 %v124, %v144
  %v193 = vmul.f32 %v125, %v144
  %v194 = vmul.f32 %v126, %v144
  %v195 = vmul.f32 %v127, %v144
  %v196 = vmul.f32 %v128, %v144
  %v197 = vmul.f32 %v129, %v144
  %v198 = vmul.f32 %v130, %v144
  %v199 = vmul.f32 %v131, %v144
  %v200 = vmul.f32 %v132, %v144
  %v201 = vmul.f32 %v133, %v144
  %v202 = vmul.f32 %v134, %v144
  %v203 = vmul.f32 %v135, %v144
  %v204 = vmul.f32 %v136, %v144
  %v205 = vmul.f32 %v137, %v144
  %v206 = vmul.f32 %v138, %v144
  %v207 = vmul.f32 %v139, %v144
  %v208 = vmul.f32 %v140, %v144
  %v209 = vmul.f32 %v141, %v144
  %v210 = vld [vmem:[%s2] sm:$0x1]
  %v212 = vperm.slane %v210, 0
  %v214 = vadd.f32 %v146, %v212
  %v215 = vadd.f32 %v147, %v212
  %v216 = vadd.f32 %v148, %v212
  %v217 = vadd.f32 %v149, %v212
  %v218 = vadd.f32 %v150, %v212
  %v219 = vadd.f32 %v151, %v212
  %v220 = vadd.f32 %v152, %v212
  %v221 = vadd.f32 %v153, %v212
  %v222 = vadd.f32 %v154, %v212
  %v223 = vadd.f32 %v155, %v212
  %v224 = vadd.f32 %v156, %v212
  %v225 = vadd.f32 %v157, %v212
  %v226 = vadd.f32 %v158, %v212
  %v227 = vadd.f32 %v159, %v212
  %v228 = vadd.f32 %v160, %v212
  %v229 = vadd.f32 %v161, %v212
  %v230 = vadd.f32 %v162, %v212
  %v231 = vadd.f32 %v163, %v212
  %v232 = vadd.f32 %v164, %v212
  %v233 = vadd.f32 %v165, %v212
  %v234 = vadd.f32 %v166, %v212
  %v235 = vadd.f32 %v167, %v212
  %v236 = vadd.f32 %v168, %v212
  %v237 = vadd.f32 %v169, %v212
  %v238 = vadd.f32 %v170, %v212
  %v239 = vadd.f32 %v171, %v212
  %v240 = vadd.f32 %v172, %v212
  %v241 = vadd.f32 %v173, %v212
  %v242 = vadd.f32 %v174, %v212
  %v243 = vadd.f32 %v175, %v212
  %v244 = vadd.f32 %v176, %v212
  %v245 = vadd.f32 %v177, %v212
  %v246 = vadd.f32 %v178, %v212
  %v247 = vadd.f32 %v179, %v212
  %v248 = vadd.f32 %v180, %v212
  %v249 = vadd.f32 %v181, %v212
  %v250 = vadd.f32 %v182, %v212
  %v251 = vadd.f32 %v183, %v212
  %v252 = vadd.f32 %v184, %v212
  %v253 = vadd.f32 %v185, %v212
  %v254 = vadd.f32 %v186, %v212
  %v255 = vadd.f32 %v187, %v212
  %v256 = vadd.f32 %v188, %v212
  %v257 = vadd.f32 %v189, %v212
  %v258 = vadd.f32 %v190, %v212
  %v259 = vadd.f32 %v191, %v212
  %v260 = vadd.f32 %v192, %v212
  %v261 = vadd.f32 %v193, %v212
  %v262 = vadd.f32 %v194, %v212
  %v263 = vadd.f32 %v195, %v212
  %v264 = vadd.f32 %v196, %v212
  %v265 = vadd.f32 %v197, %v212
  %v266 = vadd.f32 %v198, %v212
  %v267 = vadd.f32 %v199, %v212
  %v268 = vadd.f32 %v200, %v212
  %v269 = vadd.f32 %v201, %v212
  %v270 = vadd.f32 %v202, %v212
  %v271 = vadd.f32 %v203, %v212
  %v272 = vadd.f32 %v204, %v212
  %v273 = vadd.f32 %v205, %v212
  %v274 = vadd.f32 %v206, %v212
  %v275 = vadd.f32 %v207, %v212
  %v276 = vadd.f32 %v208, %v212
  %v277 = vadd.f32 %v209, %v212
  %v278 = vmax.f32 %v214, 0.0
  %v279 = vmax.f32 %v215, 0.0
  %v280 = vmax.f32 %v216, 0.0
  %v281 = vmax.f32 %v217, 0.0
  %v282 = vmax.f32 %v218, 0.0
  %v283 = vmax.f32 %v219, 0.0
  %v284 = vmax.f32 %v220, 0.0
  %v285 = vmax.f32 %v221, 0.0
  %v286 = vmax.f32 %v222, 0.0
  %v287 = vmax.f32 %v223, 0.0
  %v288 = vmax.f32 %v224, 0.0
  %v289 = vmax.f32 %v225, 0.0
  %v290 = vmax.f32 %v226, 0.0
  %v291 = vmax.f32 %v227, 0.0
  %v292 = vmax.f32 %v228, 0.0
  %v293 = vmax.f32 %v229, 0.0
  %v294 = vmax.f32 %v230, 0.0
  %v295 = vmax.f32 %v231, 0.0
  %v296 = vmax.f32 %v232, 0.0
  %v297 = vmax.f32 %v233, 0.0
  %v298 = vmax.f32 %v234, 0.0
  %v299 = vmax.f32 %v235, 0.0
  %v300 = vmax.f32 %v236, 0.0
  %v301 = vmax.f32 %v237, 0.0
  %v302 = vmax.f32 %v238, 0.0
  %v303 = vmax.f32 %v239, 0.0
  %v304 = vmax.f32 %v240, 0.0
  %v305 = vmax.f32 %v241, 0.0
  %v306 = vmax.f32 %v242, 0.0
  %v307 = vmax.f32 %v243, 0.0
  %v308 = vmax.f32 %v244, 0.0
  %v309 = vmax.f32 %v245, 0.0
  %v310 = vmax.f32 %v246, 0.0
  %v311 = vmax.f32 %v247, 0.0
  %v312 = vmax.f32 %v248, 0.0
  %v313 = vmax.f32 %v249, 0.0
  %v314 = vmax.f32 %v250, 0.0
  %v315 = vmax.f32 %v251, 0.0
  %v316 = vmax.f32 %v252, 0.0
  %v317 = vmax.f32 %v253, 0.0
  %v318 = vmax.f32 %v254, 0.0
  %v319 = vmax.f32 %v255, 0.0
  %v320 = vmax.f32 %v256, 0.0
  %v321 = vmax.f32 %v257, 0.0
  %v322 = vmax.f32 %v258, 0.0
  %v323 = vmax.f32 %v259, 0.0
  %v324 = vmax.f32 %v260, 0.0
  %v325 = vmax.f32 %v261, 0.0
  %v326 = vmax.f32 %v262, 0.0
  %v327 = vmax.f32 %v263, 0.0
  %v328 = vmax.f32 %v264, 0.0
  %v329 = vmax.f32 %v265, 0.0
  %v330 = vmax.f32 %v266, 0.0
  %v331 = vmax.f32 %v267, 0.0
  %v332 = vmax.f32 %v268, 0.0
  %v333 = vmax.f32 %v269, 0.0
  %v334 = vmax.f32 %v270, 0.0
  %v335 = vmax.f32 %v271, 0.0
  %v336 = vmax.f32 %v272, 0.0
  %v337 = vmax.f32 %v273, 0.0
  %v338 = vmax.f32 %v274, 0.0
  %v339 = vmax.f32 %v275, 0.0
  %v340 = vmax.f32 %v276, 0.0
  %v341 = vmax.f32 %v277, 0.0
  %342 = vst [vmem:[%s3] sm:$0xff] %v278
  %343 = vst [vmem:[%s3 + $0x8] sm:$0xff] %v279
  %344 = vst [vmem:[%s3 + $0x10] sm:$0xff] %v280
  %345 = vst [vmem:[%s3 + $0x18] sm:$0xff] %v281
  %346 = vst [vmem:[%s3 + $0x20] sm:$0xff] %v282
  %347 = vst [vmem:[%s3 + $0x28] sm:$0xff] %v283
  %348 = vst [vmem:[%s3 + $0x30] sm:$0xff] %v284
  %349 = vst [vmem:[%s3 + $0x38] sm:$0xff] %v285
  %350 = vst [vmem:[%s3 + $0x40] sm:$0xff] %v286
  %351 = vst [vmem:[%s3 + $0x48] sm:$0xff] %v287
  %352 = vst [vmem:[%s3 + $0x50] sm:$0xff] %v288
  %353 = vst [vmem:[%s3 + $0x58] sm:$0xff] %v289
  %354 = vst [vmem:[%s3 + $0x60] sm:$0xff] %v290
  %355 = vst [vmem:[%s3 + $0x68] sm:$0xff] %v291
  %356 = vst [vmem:[%s3 + $0x70] sm:$0xff] %v292
  %357 = vst [vmem:[%s3 + $0x78] sm:$0xff] %v293
  %358 = vst [vmem:[%s3 + $0x80] sm:$0xff] %v294
  %359 = vst [vmem:[%s3 + $0x88] sm:$0xff] %v295
  %360 = vst [vmem:[%s3 + $0x90] sm:$0xff] %v296
  %361 = vst [vmem:[%s3 + $0x98] sm:$0xff] %v297
  %362 = vst [vmem:[%s3 + $0xa0] sm:$0xff] %v298
  %363 = vst [vmem:[%s3 + $0xa8] sm:$0xff] %v299
  %364 = vst [vmem:[%s3 + $0xb0] sm:$0xff] %v300
  %365 = vst [vmem:[%s3 + $0xb8] sm:$0xff] %v301
  %366 = vst [vmem:[%s3 + $0xc0] sm:$0xff] %v302
  %367 = vst [vmem:[%s3 + $0xc8] sm:$0xff] %v303
  %368 = vst [vmem:[%s3 + $0xd0] sm:$0xff] %v304
  %369 = vst [vmem:[%s3 + $0xd8] sm:$0xff] %v305
  %370 = vst [vmem:[%s3 + $0xe0] sm:$0xff] %v306
  %371 = vst [vmem:[%s3 + $0xe8] sm:$0xff] %v307
  %372 = vst [vmem:[%s3 + $0xf0] sm:$0xff] %v308
  %373 = vst [vmem:[%s3 + $0xf8] sm:$0xff] %v309
  %374 = vst [vmem:[%s3 + $0x100] sm:$0xff] %v310
  %375 = vst [vmem:[%s3 + $0x108] sm:$0xff] %v311
  %376 = vst [vmem:[%s3 + $0x110] sm:$0xff] %v312
  %377 = vst [vmem:[%s3 + $0x118] sm:$0xff] %v313
  %378 = vst [vmem:[%s3 + $0x120] sm:$0xff] %v314
  %379 = vst [vmem:[%s3 + $0x128] sm:$0xff] %v315
  %380 = vst [vmem:[%s3 + $0x130] sm:$0xff] %v316
  %381 = vst [vmem:[%s3 + $0x138] sm:$0xff] %v317
  %382 = vst [vmem:[%s3 + $0x140] sm:$0xff] %v318
  %383 = vst [vmem:[%s3 + $0x148] sm:$0xff] %v319
  %384 = vst [vmem:[%s3 + $0x150] sm:$0xff] %v320
  %385 = vst [vmem:[%s3 + $0x158] sm:$0xff] %v321
  %386 = vst [vmem:[%s3 + $0x160] sm:$0xff] %v322
  %387 = vst [vmem:[%s3 + $0x168] sm:$0xff] %v323
  %388 = vst [vmem:[%s3 + $0x170] sm:$0xff] %v324
  %389 = vst [vmem:[%s3 + $0x178] sm:$0xff] %v325
  %390 = vst [vmem:[%s3 + $0x180] sm:$0xff] %v326
  %391 = vst [vmem:[%s3 + $0x188] sm:$0xff] %v327
  %392 = vst [vmem:[%s3 + $0x190] sm:$0xff] %v328
  %393 = vst [vmem:[%s3 + $0x198] sm:$0xff] %v329
  %394 = vst [vmem:[%s3 + $0x1a0] sm:$0xff] %v330
  %395 = vst [vmem:[%s3 + $0x1a8] sm:$0xff] %v331
  %396 = vst [vmem:[%s3 + $0x1b0] sm:$0xff] %v332
  %397 = vst [vmem:[%s3 + $0x1b8] sm:$0xff] %v333
  %398 = vst [vmem:[%s3 + $0x1c0] sm:$0xff] %v334
  %399 = vst [vmem:[%s3 + $0x1c8] sm:$0xff] %v335
  %400 = vst [vmem:[%s3 + $0x1d0] sm:$0xff] %v336
  %401 = vst [vmem:[%s3 + $0x1d8] sm:$0xff] %v337
  %402 = vst [vmem:[%s3 + $0x1e0] sm:$0xff] %v338
  %403 = vst [vmem:[%s3 + $0x1e8] sm:$0xff] %v339
  %404 = vst [vmem:[%s3 + $0x1f0] sm:$0xff] %v340
  %405 = vst [vmem:[%s3 + $0x1f8] sm:$0xff] %v341
  // Predicated region
  $region14: #{unet_up_forward.3} parent=0 // pred_check
    _
  $region15: #{unet_up_forward.3} parent=0 // pred_check_branch
    %407 = sbr.rel (0) target = $region17
  $region16: #{unet_up_forward.3} parent=0 // pred_region
    _
  $region17: #{unet_up_forward.3} parent=0 // pred_fallthru
    _
  // Predicated region
  $region18: #{unet_up_forward.3} parent=0 // pred_check
    _
  $region19: #{unet_up_forward.3} parent=0 // pred_check_branch
    %409 = sbr.rel (0) target = $region21
  $region20: #{unet_up_forward.3} parent=0 // pred_region
    _
  $region21: #{unet_up_forward.3} parent=0 // pred_fallthru
    _

// kernel: unet_up_forward.2
$region0: #{unet_up_forward.2}
  #allocation0 [shape = 'u32[]', space=smem, size = 0x4, offset = 0x4, fixed_abs, tag = 'smem constant byte address 0x4 - core index']
  #allocation1 [shape = 'u32[72,128]{1,0:T(1,128)}', space=vmem, size = 0x9000, scoped, tag = 'internal scratch']
  %s0 = inlined_call_operand.vmem [shape: bf16[2,1,19,19,4], index: 0, kind: input, shape index: {}]
  %s1 = inlined_call_operand.vmem [shape: bf16[4,16,128], index: 1, kind: input, shape index: {}]
  %s2 = inlined_call_operand.vmem [shape: bf16[512,128], index: 2, kind: output, shape index: {0}]
  %s3 = inlined_call_operand.vmem [shape: f32[2,1,8,128], index: 3, kind: output, shape index: {1}]
  %s4 = inlined_call_operand.vmem [shape: f32[2,1,8,128], index: 4, kind: output, shape index: {2}]
  %5 = xla_tuple %s2, %s3, %s4
  %s6 = sld [smem:[#allocation0]]
  $region57: #{unet_up_forward.2} parent=0
    _
  %s8 = ssub.s32 1, %s6
  %s9 = scalar_select 0, %s8, %s6
  loop: start=0, step=1, limit=4
  $region2: #{unet_up_forward.2} parent=0 // loop_pre_header
    _
  $region3: #{unet_up_forward.2} parent=0 // loop_header
    %s11 = sphi 0, %s15
    %p12 = scmp.ge.s32.totalorder %s11, 4
    %s18 = sphi 0, %s30
    %s19 = sphi 0, %s26
    %s20 = sphi 0, %s18
    %s21 = sphi 0, %s19
    %s22 = sphi 0, %s20
    %s23 = sphi 0, %s21
    %s35 = sphi 0, %s37
    %s38 = sphi 0, %s35
    %s39 = sphi 0, %s38
    %s55 = sphi 0, %s39
    %s59 = sphi 0, %s59
    %s61 = sphi 0, %s59
    %s62 = sphi 0, %s61
    %s76 = sphi 0, %s62
    %s84 = sphi 0, %s86
    %s87 = sphi 0, %s84
    %s88 = sphi 0, %s87
    %s104 = sphi 0, %s88
    %s112 = sphi 0, %s114
    %s115 = sphi 0, %s112
    %s116 = sphi 0, %s115
    %s132 = sphi 0, %s116
    %s140 = sphi 0, %s142
    %s143 = sphi 0, %s140
    %s144 = sphi 0, %s143
    %s160 = sphi 0, %s144
  $region4: #{unet_up_forward.2} parent=0 // loop_header_branch
    %14 = sbr.rel (%p12) target = $region8
  $region5: #{unet_up_forward.2} parent=0 // loop_body
    %s16 = ssub.s32 %s11, 1
    %s17 = ssub.s32 %s11, 2
    %s24 = sadd.s32 1, %s19
    %p25 = scmp.ge.s32.totalorder %s24, 1
    %s26 = scalar_select %p25, 0, %s24
    %s27 = sadd.s32 1, %s18
    %s28 = scalar_select %p25, %s27, %s18
    %p29 = scmp.ge.s32.totalorder %s28, 2
    %s30 = scalar_select %p29, 0, %s28
    %s31 = ssub.s32 %s18, %s30
    %s32 = ssub.s32 %s19, %s26
    %s33 = sor.u32 %s31, %s32
    %p34 = scmp.eq.s32.totalorder %s33, 0
    %s36 = sadd.s32 %s35, 1
    %s37 = scalar_select %p34, %s35, %s36
    %p40 = pneg %p34
    %p41 = scmp.eq.s32.totalorder %s11, 1
    %p42 = por %p40, %p41
    %p43 = scmp.ne.s32.totalorder %s35, %s38
    %p44 = scmp.eq.s32.totalorder %s11, 0
    %p45 = por %p43, %p44
    %p46 = scmp.ne.s32.totalorder %s35, %s38
    %p47 = scmp.eq.s32.totalorder %s16, 1
    %p48 = por %p46, %p47
    %p49 = scmp.ne.s32.totalorder %s38, %s39
    %p50 = scmp.eq.s32.totalorder %s16, 0
    %p51 = por %p49, %p50
    %p52 = scmp.ne.s32.totalorder %s38, %s39
    %p53 = scmp.eq.s32.totalorder %s17, 1
    %p54 = por %p52, %p53
    %p56 = scmp.ne.s32.totalorder %s39, %s55
    %p57 = scmp.eq.s32.totalorder %s17, 0
    %p58 = por %p56, %p57
    %s60 = sadd.s32 %s59, 1
    %p63 = scmp.eq.s32.totalorder %s11, 1
    %p64 = scmp.ne.s32.totalorder %s59, %s61
    %p65 = scmp.eq.s32.totalorder %s11, 0
    %p66 = por %p64, %p65
    %p67 = scmp.ne.s32.totalorder %s59, %s61
    %p68 = scmp.eq.s32.totalorder %s16, 1
    %p69 = por %p67, %p68
    %p70 = scmp.ne.s32.totalorder %s61, %s62
    %p71 = scmp.eq.s32.totalorder %s16, 0
    %p72 = por %p70, %p71
    %p73 = scmp.ne.s32.totalorder %s61, %s62
    %p74 = scmp.eq.s32.totalorder %s17, 1
    %p75 = por %p73, %p74
    %p77 = scmp.ne.s32.totalorder %s62, %s76
    %p78 = scmp.eq.s32.totalorder %s17, 0
    %p79 = por %p77, %p78
    %s80 = sadd.s32 %s18, %s19
    %s81 = sadd.s32 %s30, %s26
    %s82 = ssub.s32 %s80, %s81
    %p83 = scmp.eq.s32.totalorder %s82, 0
    %s85 = sadd.s32 %s84, 1
    %s86 = scalar_select %p83, %s84, %s85
    %p89 = pneg %p83
    %p90 = scmp.eq.s32.totalorder %s11, 1
    %p91 = por %p89, %p90
    %p92 = scmp.ne.s32.totalorder %s84, %s87
    %p93 = scmp.eq.s32.totalorder %s11, 0
    %p94 = por %p92, %p93
    %p95 = scmp.ne.s32.totalorder %s84, %s87
    %p96 = scmp.eq.s32.totalorder %s16, 1
    %p97 = por %p95, %p96
    %p98 = scmp.ne.s32.totalorder %s87, %s88
    %p99 = scmp.eq.s32.totalorder %s16, 0
    %p100 = por %p98, %p99
    %p101 = scmp.ne.s32.totalorder %s87, %s88
    %p102 = scmp.eq.s32.totalorder %s17, 1
    %p103 = por %p101, %p102
    %p105 = scmp.ne.s32.totalorder %s88, %s104
    %p106 = scmp.eq.s32.totalorder %s17, 0
    %p107 = por %p105, %p106
    %s108 = ssub.s32 %s18, %s30
    %s109 = ssub.s32 %s19, %s26
    %s110 = sor.u32 %s108, %s109
    %p111 = scmp.eq.s32.totalorder %s110, 0
    %s113 = sadd.s32 %s112, 1
    %s114 = scalar_select %p111, %s112, %s113
    %p117 = pneg %p111
    %p118 = scmp.eq.s32.totalorder %s11, 1
    %p119 = por %p117, %p118
    %p120 = scmp.ne.s32.totalorder %s112, %s115
    %p121 = scmp.eq.s32.totalorder %s11, 0
    %p122 = por %p120, %p121
    %p123 = scmp.ne.s32.totalorder %s112, %s115
    %p124 = scmp.eq.s32.totalorder %s16, 1
    %p125 = por %p123, %p124
    %p126 = scmp.ne.s32.totalorder %s115, %s116
    %p127 = scmp.eq.s32.totalorder %s16, 0
    %p128 = por %p126, %p127
    %p129 = scmp.ne.s32.totalorder %s115, %s116
    %p130 = scmp.eq.s32.totalorder %s17, 1
    %p131 = por %p129, %p130
    %p133 = scmp.ne.s32.totalorder %s116, %s132
    %p134 = scmp.eq.s32.totalorder %s17, 0
    %p135 = por %p133, %p134
    %s136 = ssub.s32 %s18, %s30
    %s137 = ssub.s32 %s19, %s26
    %s138 = sor.u32 %s136, %s137
    %p139 = scmp.eq.s32.totalorder %s138, 0
    %s141 = sadd.s32 %s140, 1
    %s142 = scalar_select %p139, %s140, %s141
    %p145 = pneg %p139
    %p146 = scmp.eq.s32.totalorder %s11, 1
    %p147 = por %p145, %p146
    %p148 = scmp.ne.s32.totalorder %s140, %s143
    %p149 = scmp.eq.s32.totalorder %s11, 0
    %p150 = por %p148, %p149
    %p151 = scmp.ne.s32.totalorder %s140, %s143
    %p152 = scmp.eq.s32.totalorder %s16, 1
    %p153 = por %p151, %p152
    %p154 = scmp.ne.s32.totalorder %s143, %s144
    %p155 = scmp.eq.s32.totalorder %s16, 0
    %p156 = por %p154, %p155
    %p157 = scmp.ne.s32.totalorder %s143, %s144
    %p158 = scmp.eq.s32.totalorder %s17, 1
    %p159 = por %p157, %p158
    %p161 = scmp.ne.s32.totalorder %s144, %s160
    %p162 = scmp.eq.s32.totalorder %s17, 0
    %p163 = por %p161, %p162
    %p164 = scmp.le.s32.totalorder 1, %s11
    %p165 = scmp.lt.s32.totalorder %s11, 3
    %p166 = pnand %p164, %p165
    %p167 = pneg %p166
    // Predicated region
    $region9: #{unet_up_forward.2} parent=5 // pred_check
      _
    $region10: #{unet_up_forward.2} parent=5 // pred_check_branch
      %169 = sbr.rel (%p166) target = $region12
    $region11: #{unet_up_forward.2} parent=5 // pred_region
      %s170 = ssub.s32 %s11, 1
      // Predicated region
      $region13: #{unet_up_forward.2} parent=11 // pred_check
        %p171 = pneg %p72
      $region14: #{unet_up_forward.2} parent=11 // pred_check_branch
        %173 = sbr.rel (%p171) target = $region16
      $region15: #{unet_up_forward.2} parent=11 // pred_region
        _
      $region16: #{unet_up_forward.2} parent=11 // pred_fallthru
        _
    $region12: #{unet_up_forward.2} parent=5 // pred_fallthru
      _
    %p174 = scmp.lt.s32.totalorder %s11, 2
    // Predicated region
    $region17: #{unet_up_forward.2} parent=5 // pred_check
      %p175 = pneg %p174
    $region18: #{unet_up_forward.2} parent=5 // pred_check_branch
      %177 = sbr.rel (%p175) target = $region20
    $region19: #{unet_up_forward.2} parent=5 // pred_region
      // Predicated region
      $region21: #{unet_up_forward.2} parent=19 // pred_check
        %p178 = pneg %p45
      $region22: #{unet_up_forward.2} parent=19 // pred_check_branch
        %180 = sbr.rel (%p178) target = $region24
      $region23: #{unet_up_forward.2} parent=19 // pred_region
        %p181 = scmp.lt.s32.totalorder %s18, 1
        %s182 = scalar_select %p181, %s18, 1
        %p183 = scmp.lt.s32.totalorder %s19, 0
        %s184 = scalar_select %p183, %s19, 0
        %s185 = smul.addr %s184, 57
        %s186 = smul.addr %s182, 57
        %s187 = sadd.s32 %s185, %s186
        %s188 = smul.addr %s187, 4
        %s189 = scalar_lea.vmem %s0, %s188
      $region24: #{unet_up_forward.2} parent=19 // pred_fallthru
        _
    $region20: #{unet_up_forward.2} parent=5 // pred_fallthru
      _
    %p190 = scmp.le.s32.totalorder 1, %s11
    %p191 = scmp.lt.s32.totalorder %s11, 3
    %p192 = pnand %p190, %p191
    %p193 = pneg %p192
    // Predicated region
    $region25: #{unet_up_forward.2} parent=5 // pred_check
      _
    $region26: #{unet_up_forward.2} parent=5 // pred_check_branch
      %195 = sbr.rel (%p192) target = $region28
    $region27: #{unet_up_forward.2} parent=5 // pred_region
      %s196 = ssub.s32 %s11, 1
      %p197 = scmp.lt.s32.totalorder %s20, 1
      %s198 = scalar_select %p197, %s20, 1
      %p199 = scmp.lt.s32.totalorder %s21, 0
      %s200 = scalar_select %p199, %s21, 0
      %s201 = smul.addr %s200, 57
      %s202 = smul.addr %s198, 57
      %s203 = sadd.s32 %s201, %s202
      %s204 = smul.addr %s203, 4
      %s205 = scalar_lea.vmem %s0, %s204
      %p206 = pneg %p51
      %p207 = pneg %p48
      %p208 = pneg %p72
      %p209 = pneg %p69
      %p210 = pneg %p100
      %p211 = pneg %p97
      %s212 = sadd.s32 %s20, %s21
      %s213 = smul.u32 32, %s212
      %p214 = scmp.lt.s32.totalorder %s213, 63
      %s215 = scalar_select %p214, %s213, 63
      %s216 = smul.addr %s215, 4
      %s217 = scalar_lea.vmem %s2, %s216
      %p218 = pneg %p128
      %p219 = pneg %p125
      %p220 = scmp.lt.s32.totalorder %s20, 1
      %s221 = scalar_select %p220, %s20, 1
      %p222 = scmp.lt.s32.totalorder %s21, 0
      %s223 = scalar_select %p222, %s21, 0
      %s224 = sadd.s32 %s223, %s221
      %s225 = smul.addr %s224, 8
      %s226 = scalar_lea.vmem %s3, %s225
      %p227 = pneg %p156
      %p228 = pneg %p153
      %p229 = scmp.lt.s32.totalorder %s20, 1
      %s230 = scalar_select %p229, %s20, 1
      %p231 = scmp.lt.s32.totalorder %s21, 0
      %s232 = scalar_select %p231, %s21, 0
      %s233 = sadd.s32 %s232, %s230
      %s234 = smul.addr %s233, 8
      %s235 = scalar_lea.vmem %s4, %s234
      %p236 = scmp.lt.s32.totalorder %s20, 1
      %s237 = scalar_select %p236, %s20, 1
      %p238 = scmp.lt.s32.totalorder %s21, 0
      %s239 = scalar_select %p238, %s21, 0
      %s240 = smul.addr %s239, 57
      %s241 = smul.addr %s237, 57
      %s242 = sadd.s32 %s240, %s241
      %s243 = smul.addr %s242, 4
      %s244 = scalar_lea.vmem %s0, %s243
      %s245 = sadd.s32 %s20, %s21
      %s246 = smul.u32 32, %s245
      %p247 = scmp.lt.s32.totalorder %s246, 63
      %s248 = scalar_select %p247, %s246, 63
      %s249 = smul.addr %s248, 4
      %s250 = scalar_lea.vmem %s2, %s249
      %s251 = sadd.s32 %s20, %s21
      %s252 = smul.u32 32, %s251
      %p253 = scmp.lt.s32.totalorder %s20, 1
      %s254 = scalar_select %p253, %s20, 1
      %p255 = scmp.lt.s32.totalorder %s21, 0
      %s256 = scalar_select %p255, %s21, 0
      %s257 = sadd.s32 %s256, %s254
      %s258 = smul.addr %s257, 8
      %s259 = scalar_lea.vmem %s3, %s258
      %p260 = scmp.lt.s32.totalorder %s20, 1
      %s261 = scalar_select %p260, %s20, 1
      %p262 = scmp.lt.s32.totalorder %s21, 0
      %s263 = scalar_select %p262, %s21, 0
      %s264 = sadd.s32 %s263, %s261
      %s265 = smul.addr %s264, 8
      %s266 = scalar_lea.vmem %s4, %s265
      %v268 = vld [vmem:[%s244] sm:$0xf]
      %v269 = vld [vmem:[%s244 + $0x4] sm:$0xf]
      %v270 = vld [vmem:[%s244 + $0xc] sm:$0xf]
      %v271 = vld [vmem:[%s244 + $0x10] sm:$0xf]
      %v272 = vld [vmem:[%s244 + $0x18] sm:$0xf]
      %v273 = vld [vmem:[%s244 + $0x1c] sm:$0xf]
      %v274 = vld [vmem:[%s244 + $0x24] sm:$0xf]
      %v275 = vld [vmem:[%s244 + $0x28] sm:$0xf]
      %v276 = vld [vmem:[%s244 + $0x30] sm:$0xf]
      %v277 = vld [vmem:[%s244 + $0x34] sm:$0xf]
      %v278 = vld [vmem:[%s244 + $0x3c] sm:$0xf]
      %v279 = vld [vmem:[%s244 + $0x40] sm:$0xf]
      %v280 = vld [vmem:[%s244 + $0x48] sm:$0xf]
      %v281 = vld [vmem:[%s244 + $0x4c] sm:$0xf]
      %v282 = vld [vmem:[%s244 + $0x54] sm:$0xf]
      %v283 = vld [vmem:[%s244 + $0x58] sm:$0xf]
      %v284 = vld [vmem:[%s244 + $0x60] sm:$0xf]
      %v285 = vld [vmem:[%s244 + $0x64] sm:$0xf]
      %v286 = vld [vmem:[%s244 + $0x6c] sm:$0xf]
      %v287 = vld [vmem:[%s244 + $0x70] sm:$0xf]
      %v288 = vld [vmem:[%s244 + $0x78] sm:$0xf]
      %v289 = vld [vmem:[%s244 + $0x7c] sm:$0xf]
      %v290 = vld [vmem:[%s244 + $0x84] sm:$0xf]
      %v291 = vld [vmem:[%s244 + $0x88] sm:$0xf]
      %v292 = vld [vmem:[%s244 + $0x90] sm:$0xf]
      %v293 = vld [vmem:[%s244 + $0x94] sm:$0xf]
      %v294 = vld [vmem:[%s244 + $0x9c] sm:$0xf]
      %v295 = vld [vmem:[%s244 + $0xa0] sm:$0xf]
      %v296 = vld [vmem:[%s244 + $0xa8] sm:$0xf]
      %v297 = vld [vmem:[%s244 + $0xac] sm:$0xf]
      %v298 = vld [vmem:[%s244 + $0xb4] sm:$0xf]
      %v299 = vld [vmem:[%s244 + $0xb8] sm:$0xf]
      %v300 = vld [vmem:[%s244 + $0xc0] sm:$0xf]
      %v301 = vld [vmem:[%s244 + $0xc4] sm:$0xf]
      %v302 = vld [vmem:[%s244 + $0xcc] sm:$0xf]
      %v303 = vld [vmem:[%s244 + $0xd0] sm:$0xf]
      %v304 = vld [vmem:[%s244 + $0xd8] sm:$0xf]
      %v305 = vld [vmem:[%s244 + $0xdc] sm:$0xf]
      %v306 = vld [vmem:[%s244 + $0x8] sm:$0x1]
      %v307 = vld [vmem:[%s244 + $0x14] sm:$0x1]
      %v308 = vld [vmem:[%s244 + $0x20] sm:$0x1]
      %v309 = vld [vmem:[%s244 + $0x2c] sm:$0x1]
      %v310 = vld [vmem:[%s244 + $0x38] sm:$0x1]
      %v311 = vld [vmem:[%s244 + $0x44] sm:$0x1]
      %v312 = vld [vmem:[%s244 + $0x50] sm:$0x1]
      %v313 = vld [vmem:[%s244 + $0x5c] sm:$0x1]
      %v314 = vld [vmem:[%s244 + $0x68] sm:$0x1]
      %v315 = vld [vmem:[%s244 + $0x74] sm:$0x1]
      %v316 = vld [vmem:[%s244 + $0x80] sm:$0x1]
      %v317 = vld [vmem:[%s244 + $0x8c] sm:$0x1]
      %v318 = vld [vmem:[%s244 + $0x98] sm:$0x1]
      %v319 = vld [vmem:[%s244 + $0xa4] sm:$0x1]
      %v320 = vld [vmem:[%s244 + $0xb0] sm:$0x1]
      %v321 = vld [vmem:[%s244 + $0xbc] sm:$0x1]
      %v322 = vld [vmem:[%s244 + $0xc8] sm:$0x1]
      %v323 = vld [vmem:[%s244 + $0xd4] sm:$0x1]
      %v324 = vld [vmem:[%s244 + $0xe0] sm:$0x1]
      %v325 = vld [vmem:[%s244] sm:$0xe]
      %v326 = vld [vmem:[%s244 + $0xc] sm:$0xe]
      %v327 = vld [vmem:[%s244 + $0x18] sm:$0xe]
      %v328 = vld [vmem:[%s244 + $0x24] sm:$0xe]
      %v329 = vld [vmem:[%s244 + $0x30] sm:$0xe]
      %v330 = vld [vmem:[%s244 + $0x3c] sm:$0xe]
      %v331 = vld [vmem:[%s244 + $0x48] sm:$0xe]
      %v332 = vld [vmem:[%s244 + $0x54] sm:$0xe]
      %v333 = vld [vmem:[%s244 + $0x60] sm:$0xe]
      %v334 = vld [vmem:[%s244 + $0x6c] sm:$0xe]
      %v335 = vld [vmem:[%s244 + $0x78] sm:$0xe]
      %v336 = vld [vmem:[%s244 + $0x84] sm:$0xe]
      %v337 = vld [vmem:[%s244 + $0x90] sm:$0xe]
      %v338 = vld [vmem:[%s244 + $0x9c] sm:$0xe]
      %v339 = vld [vmem:[%s244 + $0xa8] sm:$0xe]
      %v340 = vld [vmem:[%s244 + $0xb4] sm:$0xe]
      %v341 = vld [vmem:[%s244 + $0xc0] sm:$0xe]
      %v342 = vld [vmem:[%s244 + $0xcc] sm:$0xe]
      %v343 = vld [vmem:[%s244 + $0xd8] sm:$0xe]
      %v344 = vld [vmem:[%s244 + $0x8] sm:$0x3]
      %v345 = vld [vmem:[%s244 + $0x14] sm:$0x3]
      %v346 = vld [vmem:[%s244 + $0x20] sm:$0x3]
      %v347 = vld [vmem:[%s244 + $0x2c] sm:$0x3]
      %v348 = vld [vmem:[%s244 + $0x38] sm:$0x3]
      %v349 = vld [vmem:[%s244 + $0x44] sm:$0x3]
      %v350 = vld [vmem:[%s244 + $0x50] sm:$0x3]
      %v351 = vld [vmem:[%s244 + $0x5c] sm:$0x3]
      %v352 = vld [vmem:[%s244 + $0x68] sm:$0x3]
      %v353 = vld [vmem:[%s244 + $0x74] sm:$0x3]
      %v354 = vld [vmem:[%s244 + $0x80] sm:$0x3]
      %v355 = vld [vmem:[%s244 + $0x8c] sm:$0x3]
      %v356 = vld [vmem:[%s244 + $0x98] sm:$0x3]
      %v357 = vld [vmem:[%s244 + $0xa4] sm:$0x3]
      %v358 = vld [vmem:[%s244 + $0xb0] sm:$0x3]
      %v359 = vld [vmem:[%s244 + $0xbc] sm:$0x3]
      %v360 = vld [vmem:[%s244 + $0xc8] sm:$0x3]
      %v361 = vld [vmem:[%s244 + $0xd4] sm:$0x3]
      %v362 = vld [vmem:[%s244 + $0xe0] sm:$0x3]
      %v401 = vunpack.c.l.b16 %v268
      %v402 = vunpack.c.l.b16 %v269
      %v403 = vunpack.c.l.b16 %v270
      %v404 = vunpack.c.l.b16 %v271
      %v405 = vunpack.c.l.b16 %v272
      %v406 = vunpack.c.l.b16 %v273
      %v407 = vunpack.c.l.b16 %v274
      %v408 = vunpack.c.l.b16 %v275
      %v409 = vunpack.c.l.b16 %v276
      %v410 = vunpack.c.l.b16 %v277
      %v411 = vunpack.c.l.b16 %v278
      %v412 = vunpack.c.l.b16 %v279
      %v413 = vunpack.c.l.b16 %v280
      %v414 = vunpack.c.l.b16 %v281
      %v415 = vunpack.c.l.b16 %v282
      %v416 = vunpack.c.l.b16 %v283
      %v417 = vunpack.c.l.b16 %v284
      %v418 = vunpack.c.l.b16 %v285
      %v419 = vunpack.c.l.b16 %v286
      %v420 = vunpack.c.l.b16 %v287
      %v421 = vunpack.c.l.b16 %v288
      %v422 = vunpack.c.l.b16 %v289
      %v423 = vunpack.c.l.b16 %v290
      %v424 = vunpack.c.l.b16 %v291
      %v425 = vunpack.c.l.b16 %v292
      %v426 = vunpack.c.l.b16 %v293
      %v427 = vunpack.c.l.b16 %v294
      %v428 = vunpack.c.l.b16 %v295
      %v429 = vunpack.c.l.b16 %v296
      %v430 = vunpack.c.l.b16 %v297
      %v431 = vunpack.c.l.b16 %v298
      %v432 = vunpack.c.l.b16 %v299
      %v433 = vunpack.c.l.b16 %v300
      %v434 = vunpack.c.l.b16 %v301
      %v435 = vunpack.c.l.b16 %v302
      %v436 = vunpack.c.l.b16 %v303
      %v437 = vunpack.c.l.b16 %v304
      %v438 = vunpack.c.l.b16 %v305
      %v439 = vpack.c.b16 %v402, %v401
      %v440 = vpack.c.b16 %v404, %v403
      %v441 = vpack.c.b16 %v406, %v405
      %v442 = vpack.c.b16 %v408, %v407
      %v443 = vpack.c.b16 %v410, %v409
      %v444 = vpack.c.b16 %v412, %v411
      %v445 = vpack.c.b16 %v414, %v413
      %v446 = vpack.c.b16 %v416, %v415
      %v447 = vpack.c.b16 %v418, %v417
      %v448 = vpack.c.b16 %v420, %v419
      %v449 = vpack.c.b16 %v422, %v421
      %v450 = vpack.c.b16 %v424, %v423
      %v451 = vpack.c.b16 %v426, %v425
      %v452 = vpack.c.b16 %v428, %v427
      %v453 = vpack.c.b16 %v430, %v429
      %v454 = vpack.c.b16 %v432, %v431
      %v455 = vpack.c.b16 %v434, %v433
      %v456 = vpack.c.b16 %v436, %v435
      %v457 = vpack.c.b16 %v438, %v437
      %v477 = vunpack.c.l.b16 %v306
      %v478 = vunpack.c.l.b16 %v307
      %v479 = vunpack.c.l.b16 %v308
      %v480 = vunpack.c.l.b16 %v309
      %v481 = vunpack.c.l.b16 %v310
      %v482 = vunpack.c.l.b16 %v311
      %v483 = vunpack.c.l.b16 %v312
      %v484 = vunpack.c.l.b16 %v313
      %v485 = vunpack.c.l.b16 %v314
      %v486 = vunpack.c.l.b16 %v315
      %v487 = vunpack.c.l.b16 %v316
      %v488 = vunpack.c.l.b16 %v317
      %v489 = vunpack.c.l.b16 %v318
      %v490 = vunpack.c.l.b16 %v319
      %v491 = vunpack.c.l.b16 %v320
      %v492 = vunpack.c.l.b16 %v321
      %v493 = vunpack.c.l.b16 %v322
      %v494 = vunpack.c.l.b16 %v323
      %v495 = vunpack.c.l.b16 %v324
      %v496 = vpack.c.b16 %v477, %v477
      %v497 = vpack.c.b16 %v478, %v478
      %v498 = vpack.c.b16 %v479, %v479
      %v499 = vpack.c.b16 %v480, %v480
      %v500 = vpack.c.b16 %v481, %v481
      %v501 = vpack.c.b16 %v482, %v482
      %v502 = vpack.c.b16 %v483, %v483
      %v503 = vpack.c.b16 %v484, %v484
      %v504 = vpack.c.b16 %v485, %v485
      %v505 = vpack.c.b16 %v486, %v486
      %v506 = vpack.c.b16 %v487, %v487
      %v507 = vpack.c.b16 %v488, %v488
      %v508 = vpack.c.b16 %v489, %v489
      %v509 = vpack.c.b16 %v490, %v490
      %v510 = vpack.c.b16 %v491, %v491
      %v511 = vpack.c.b16 %v492, %v492
      %v512 = vpack.c.b16 %v493, %v493
      %v513 = vpack.c.b16 %v494, %v494
      %v514 = vpack.c.b16 %v495, %v495
      %vm515 = vsmask.f32 7424
      %v517 = vshrl.u32 %v439, 16
      %v519 = vshll.u32 %v439, 16
      %v521 = vrot.slane %v519, 1
      %v522 = vor.u32 %v517, %v521
      %v524 = vshll.u32 %v496, 16
      %v526 = vrot.slane %v524, 1
      %v527 = vsel %vm515, %v522, %v526
      %v529 = vshrl.u32 %v440, 16
      %v531 = vshll.u32 %v440, 16
      %v533 = vrot.slane %v531, 1
      %v534 = vor.u32 %v529, %v533
      %v536 = vshll.u32 %v497, 16
      %v538 = vrot.slane %v536, 1
      %v539 = vsel %vm515, %v534, %v538
      %v541 = vshrl.u32 %v441, 16
      %v543 = vshll.u32 %v441, 16
      %v545 = vrot.slane %v543, 1
      %v546 = vor.u32 %v541, %v545
      %v548 = vshll.u32 %v498, 16
      %v550 = vrot.slane %v548, 1
      %v551 = vsel %vm515, %v546, %v550
      %v553 = vshrl.u32 %v442, 16
      %v555 = vshll.u32 %v442, 16
      %v557 = vrot.slane %v555, 1
      %v558 = vor.u32 %v553, %v557
      %v560 = vshll.u32 %v499, 16
      %v562 = vrot.slane %v560, 1
      %v563 = vsel %vm515, %v558, %v562
      %v565 = vshrl.u32 %v443, 16
      %v567 = vshll.u32 %v443, 16
      %v569 = vrot.slane %v567, 1
      %v570 = vor.u32 %v565, %v569
      %v572 = vshll.u32 %v500, 16
      %v574 = vrot.slane %v572, 1
      %v575 = vsel %vm515, %v570, %v574
      %v577 = vshrl.u32 %v444, 16
      %v579 = vshll.u32 %v444, 16
      %v581 = vrot.slane %v579, 1
      %v582 = vor.u32 %v577, %v581
      %v584 = vshll.u32 %v501, 16
      %v586 = vrot.slane %v584, 1
      %v587 = vsel %vm515, %v582, %v586
      %v589 = vshrl.u32 %v445, 16
      %v591 = vshll.u32 %v445, 16
      %v593 = vrot.slane %v591, 1
      %v594 = vor.u32 %v589, %v593
      %v596 = vshll.u32 %v502, 16
      %v598 = vrot.slane %v596, 1
      %v599 = vsel %vm515, %v594, %v598
      %v601 = vshrl.u32 %v446, 16
      %v603 = vshll.u32 %v446, 16
      %v605 = vrot.slane %v603, 1
      %v606 = vor.u32 %v601, %v605
      %v608 = vshll.u32 %v503, 16
      %v610 = vrot.slane %v608, 1
      %v611 = vsel %vm515, %v606, %v610
      %v613 = vshrl.u32 %v447, 16
      %v615 = vshll.u32 %v447, 16
      %v617 = vrot.slane %v615, 1
      %v618 = vor.u32 %v613, %v617
      %v620 = vshll.u32 %v504, 16
      %v622 = vrot.slane %v620, 1
      %v623 = vsel %vm515, %v618, %v622
      %v625 = vshrl.u32 %v448, 16
      %v627 = vshll.u32 %v448, 16
      %v629 = vrot.slane %v627, 1
      %v630 = vor.u32 %v625, %v629
      %v632 = vshll.u32 %v505, 16
      %v634 = vrot.slane %v632, 1
      %v635 = vsel %vm515, %v630, %v634
      %v637 = vshrl.u32 %v449, 16
      %v639 = vshll.u32 %v449, 16
      %v641 = vrot.slane %v639, 1
      %v642 = vor.u32 %v637, %v641
      %v644 = vshll.u32 %v506, 16
      %v646 = vrot.slane %v644, 1
      %v647 = vsel %vm515, %v642, %v646
      %v649 = vshrl.u32 %v450, 16
      %v651 = vshll.u32 %v450, 16
      %v653 = vrot.slane %v651, 1
      %v654 = vor.u32 %v649, %v653
      %v656 = vshll.u32 %v507, 16
      %v658 = vrot.slane %v656, 1
      %v659 = vsel %vm515, %v654, %v658
      %v661 = vshrl.u32 %v451, 16
      %v663 = vshll.u32 %v451, 16
      %v665 = vrot.slane %v663, 1
      %v666 = vor.u32 %v661, %v665
      %v668 = vshll.u32 %v508, 16
      %v670 = vrot.slane %v668, 1
      %v671 = vsel %vm515, %v666, %v670
      %v673 = vshrl.u32 %v452, 16
      %v675 = vshll.u32 %v452, 16
      %v677 = vrot.slane %v675, 1
      %v678 = vor.u32 %v673, %v677
      %v680 = vshll.u32 %v509, 16
      %v682 = vrot.slane %v680, 1
      %v683 = vsel %vm515, %v678, %v682
      %v685 = vshrl.u32 %v453, 16
      %v687 = vshll.u32 %v453, 16
      %v689 = vrot.slane %v687, 1
      %v690 = vor.u32 %v685, %v689
      %v692 = vshll.u32 %v510, 16
      %v694 = vrot.slane %v692, 1
      %v695 = vsel %vm515, %v690, %v694
      %v697 = vshrl.u32 %v454, 16
      %v699 = vshll.u32 %v454, 16
      %v701 = vrot.slane %v699, 1
      %v702 = vor.u32 %v697, %v701
      %v704 = vshll.u32 %v511, 16
      %v706 = vrot.slane %v704, 1
      %v707 = vsel %vm515, %v702, %v706
      %v709 = vshrl.u32 %v455, 16
      %v711 = vshll.u32 %v455, 16
      %v713 = vrot.slane %v711, 1
      %v714 = vor.u32 %v709, %v713
      %v716 = vshll.u32 %v512, 16
      %v718 = vrot.slane %v716, 1
      %v719 = vsel %vm515, %v714, %v718
      %v721 = vshrl.u32 %v456, 16
      %v723 = vshll.u32 %v456, 16
      %v725 = vrot.slane %v723, 1
      %v726 = vor.u32 %v721, %v725
      %v728 = vshll.u32 %v513, 16
      %v730 = vrot.slane %v728, 1
      %v731 = vsel %vm515, %v726, %v730
      %v733 = vshrl.u32 %v457, 16
      %v735 = vshll.u32 %v457, 16
      %v737 = vrot.slane %v735, 1
      %v738 = vor.u32 %v733, %v737
      %v740 = vshll.u32 %v514, 16
      %v742 = vrot.slane %v740, 1
      %v743 = vsel %vm515, %v738, %v742
      %744 = vrot.lane.b32.xlu0 %v527, 4
      %v745 = vpop.permute.xlu0 %744
      %746 = vrot.lane.b32.xlu0 %v539, 4
      %v747 = vpop.permute.xlu0 %746
      %748 = vrot.lane.b32.xlu0 %v551, 4
      %v749 = vpop.permute.xlu0 %748
      %750 = vrot.lane.b32.xlu0 %v563, 4
      %v751 = vpop.permute.xlu0 %750
      %752 = vrot.lane.b32.xlu0 %v575, 4
      %v753 = vpop.permute.xlu0 %752
      %754 = vrot.lane.b32.xlu0 %v587, 4
      %v755 = vpop.permute.xlu0 %754
      %756 = vrot.lane.b32.xlu0 %v599, 4
      %v757 = vpop.permute.xlu0 %756
      %758 = vrot.lane.b32.xlu0 %v611, 4
      %v759 = vpop.permute.xlu0 %758
      %760 = vrot.lane.b32.xlu0 %v623, 4
      %v761 = vpop.permute.xlu0 %760
      %762 = vrot.lane.b32.xlu0 %v635, 4
      %v763 = vpop.permute.xlu0 %762
      %764 = vrot.lane.b32.xlu0 %v647, 4
      %v765 = vpop.permute.xlu0 %764
      %766 = vrot.lane.b32.xlu0 %v659, 4
      %v767 = vpop.permute.xlu0 %766
      %768 = vrot.lane.b32.xlu0 %v671, 4
      %v769 = vpop.permute.xlu0 %768
      %770 = vrot.lane.b32.xlu0 %v683, 4
      %v771 = vpop.permute.xlu0 %770
      %772 = vrot.lane.b32.xlu0 %v695, 4
      %v773 = vpop.permute.xlu0 %772
      %774 = vrot.lane.b32.xlu0 %v707, 4
      %v775 = vpop.permute.xlu0 %774
      %776 = vrot.lane.b32.xlu0 %v719, 4
      %v777 = vpop.permute.xlu0 %776
      %778 = vrot.lane.b32.xlu0 %v731, 4
      %v779 = vpop.permute.xlu0 %778
      %780 = vrot.lane.b32.xlu0 %v743, 4
      %v781 = vpop.permute.xlu0 %780
      %v801 = vunpack.c.l.b16 %v325
      %v802 = vunpack.c.l.b16 %v326
      %v803 = vunpack.c.l.b16 %v327
      %v804 = vunpack.c.l.b16 %v328
      %v805 = vunpack.c.l.b16 %v329
      %v806 = vunpack.c.l.b16 %v330
      %v807 = vunpack.c.l.b16 %v331
      %v808 = vunpack.c.l.b16 %v332
      %v809 = vunpack.c.l.b16 %v333
      %v810 = vunpack.c.l.b16 %v334
      %v811 = vunpack.c.l.b16 %v335
      %v812 = vunpack.c.l.b16 %v336
      %v813 = vunpack.c.l.b16 %v337
      %v814 = vunpack.c.l.b16 %v338
      %v815 = vunpack.c.l.b16 %v339
      %v816 = vunpack.c.l.b16 %v340
      %v817 = vunpack.c.l.b16 %v341
      %v818 = vunpack.c.l.b16 %v342
      %v819 = vunpack.c.l.b16 %v343
      %v820 = vpack.c.b16 %v402, %v801
      %v821 = vpack.c.b16 %v404, %v802
      %v822 = vpack.c.b16 %v406, %v803
      %v823 = vpack.c.b16 %v408, %v804
      %v824 = vpack.c.b16 %v410, %v805
      %v825 = vpack.c.b16 %v412, %v806
      %v826 = vpack.c.b16 %v414, %v807
      %v827 = vpack.c.b16 %v416, %v808
      %v828 = vpack.c.b16 %v418, %v809
      %v829 = vpack.c.b16 %v420, %v810
      %v830 = vpack.c.b16 %v422, %v811
      %v831 = vpack.c.b16 %v424, %v812
      %v832 = vpack.c.b16 %v426, %v813
      %v833 = vpack.c.b16 %v428, %v814
      %v834 = vpack.c.b16 %v430, %v815
      %v835 = vpack.c.b16 %v432, %v816
      %v836 = vpack.c.b16 %v434, %v817
      %v837 = vpack.c.b16 %v436, %v818
      %v838 = vpack.c.b16 %v438, %v819
      %vm839 = vcmask 1046528
      %v840 = vrot.slane %v820, 1
      %v841 = vrot.slane %v496, 1
      %v842 = vsel %vm839, %v840, %v841
      %v843 = vrot.slane %v821, 1
      %v844 = vrot.slane %v497, 1
      %v845 = vsel %vm839, %v843, %v844
      %v846 = vrot.slane %v822, 1
      %v847 = vrot.slane %v498, 1
      %v848 = vsel %vm839, %v846, %v847
      %v849 = vrot.slane %v823, 1
      %v850 = vrot.slane %v499, 1
      %v851 = vsel %vm839, %v849, %v850
      %v852 = vrot.slane %v824, 1
      %v853 = vrot.slane %v500, 1
      %v854 = vsel %vm839, %v852, %v853
      %v855 = vrot.slane %v825, 1
      %v856 = vrot.slane %v501, 1
      %v857 = vsel %vm839, %v855, %v856
      %v858 = vrot.slane %v826, 1
      %v859 = vrot.slane %v502, 1
      %v860 = vsel %vm839, %v858, %v859
      %v861 = vrot.slane %v827, 1
      %v862 = vrot.slane %v503, 1
      %v863 = vsel %vm839, %v861, %v862
      %v864 = vrot.slane %v828, 1
      %v865 = vrot.slane %v504, 1
      %v866 = vsel %vm839, %v864, %v865
      %v867 = vrot.slane %v829, 1
      %v868 = vrot.slane %v505, 1
      %v869 = vsel %vm839, %v867, %v868
      %v870 = vrot.slane %v830, 1
      %v871 = vrot.slane %v506, 1
      %v872 = vsel %vm839, %v870, %v871
      %v873 = vrot.slane %v831, 1
      %v874 = vrot.slane %v507, 1
      %v875 = vsel %vm839, %v873, %v874
      %v876 = vrot.slane %v832, 1
      %v877 = vrot.slane %v508, 1
      %v878 = vsel %vm839, %v876, %v877
      %v879 = vrot.slane %v833, 1
      %v880 = vrot.slane %v509, 1
      %v881 = vsel %vm839, %v879, %v880
      %v882 = vrot.slane %v834, 1
      %v883 = vrot.slane %v510, 1
      %v884 = vsel %vm839, %v882, %v883
      %v885 = vrot.slane %v835, 1
      %v886 = vrot.slane %v511, 1
      %v887 = vsel %vm839, %v885, %v886
      %v888 = vrot.slane %v836, 1
      %v889 = vrot.slane %v512, 1
      %v890 = vsel %vm839, %v888, %v889
      %v891 = vrot.slane %v837, 1
      %v892 = vrot.slane %v513, 1
      %v893 = vsel %vm839, %v891, %v892
      %v894 = vrot.slane %v838, 1
      %v895 = vrot.slane %v514, 1
      %v896 = vsel %vm839, %v894, %v895
      %897 = vrot.lane.b32.xlu0 %v842, 8
      %v898 = vpop.permute.xlu0 %897
      %899 = vrot.lane.b32.xlu0 %v845, 8
      %v900 = vpop.permute.xlu0 %899
      %901 = vrot.lane.b32.xlu0 %v848, 8
      %v902 = vpop.permute.xlu0 %901
      %903 = vrot.lane.b32.xlu0 %v851, 8
      %v904 = vpop.permute.xlu0 %903
      %905 = vrot.lane.b32.xlu0 %v854, 8
      %v906 = vpop.permute.xlu0 %905
      %907 = vrot.lane.b32.xlu0 %v857, 8
      %v908 = vpop.permute.xlu0 %907
      %909 = vrot.lane.b32.xlu0 %v860, 8
      %v910 = vpop.permute.xlu0 %909
      %911 = vrot.lane.b32.xlu0 %v863, 8
      %v912 = vpop.permute.xlu0 %911
      %913 = vrot.lane.b32.xlu0 %v866, 8
      %v914 = vpop.permute.xlu0 %913
      %915 = vrot.lane.b32.xlu0 %v869, 8
      %v916 = vpop.permute.xlu0 %915
      %917 = vrot.lane.b32.xlu0 %v872, 8
      %v918 = vpop.permute.xlu0 %917
      %919 = vrot.lane.b32.xlu0 %v875, 8
      %v920 = vpop.permute.xlu0 %919
      %921 = vrot.lane.b32.xlu0 %v878, 8
      %v922 = vpop.permute.xlu0 %921
      %923 = vrot.lane.b32.xlu0 %v881, 8
      %v924 = vpop.permute.xlu0 %923
      %925 = vrot.lane.b32.xlu0 %v884, 8
      %v926 = vpop.permute.xlu0 %925
      %927 = vrot.lane.b32.xlu0 %v887, 8
      %v928 = vpop.permute.xlu0 %927
      %929 = vrot.lane.b32.xlu0 %v890, 8
      %v930 = vpop.permute.xlu0 %929
      %931 = vrot.lane.b32.xlu0 %v893, 8
      %v932 = vpop.permute.xlu0 %931
      %933 = vrot.lane.b32.xlu0 %v896, 8
      %v934 = vpop.permute.xlu0 %933
      %v954 = vunpack.c.l.b16 %v344
      %v955 = vunpack.c.l.b16 %v345
      %v956 = vunpack.c.l.b16 %v346
      %v957 = vunpack.c.l.b16 %v347
      %v958 = vunpack.c.l.b16 %v348
      %v959 = vunpack.c.l.b16 %v349
      %v960 = vunpack.c.l.b16 %v350
      %v961 = vunpack.c.l.b16 %v351
      %v962 = vunpack.c.l.b16 %v352
      %v963 = vunpack.c.l.b16 %v353
      %v964 = vunpack.c.l.b16 %v354
      %v965 = vunpack.c.l.b16 %v355
      %v966 = vunpack.c.l.b16 %v356
      %v967 = vunpack.c.l.b16 %v357
      %v968 = vunpack.c.l.b16 %v358
      %v969 = vunpack.c.l.b16 %v359
      %v970 = vunpack.c.l.b16 %v360
      %v971 = vunpack.c.l.b16 %v361
      %v972 = vunpack.c.l.b16 %v362
      %v973 = vpack.c.b16 %v954, %v954
      %v974 = vpack.c.b16 %v955, %v955
      %v975 = vpack.c.b16 %v956, %v956
      %v976 = vpack.c.b16 %v957, %v957
      %v977 = vpack.c.b16 %v958, %v958
      %v978 = vpack.c.b16 %v959, %v959
      %v979 = vpack.c.b16 %v960, %v960
      %v980 = vpack.c.b16 %v961, %v961
      %v981 = vpack.c.b16 %v962, %v962
      %v982 = vpack.c.b16 %v963, %v963
      %v983 = vpack.c.b16 %v964, %v964
      %v984 = vpack.c.b16 %v965, %v965
      %v985 = vpack.c.b16 %v966, %v966
      %v986 = vpack.c.b16 %v967, %v967
      %v987 = vpack.c.b16 %v968, %v968
      %v988 = vpack.c.b16 %v969, %v969
      %v989 = vpack.c.b16 %v970, %v970
      %v990 = vpack.c.b16 %v971, %v971
      %v991 = vpack.c.b16 %v972, %v972
      %vm992 = vsmask.f32 6400
      %v994 = vshrl.u32 %v820, 16
      %v996 = vrot.slane %v994, 1
      %v997 = vshll.u32 %v820, 16
      %v999 = vrot.slane %v997, 2
      %v1000 = vor.u32 %v996, %v999
      %v1002 = vshrl.u32 %v973, 16
      %v1004 = vrot.slane %v1002, 1
      %v1005 = vshll.u32 %v973, 16
      %v1007 = vrot.slane %v1005, 2
      %v1008 = vor.u32 %v1004, %v1007
      %v1009 = vsel %vm992, %v1000, %v1008
      %v1011 = vshrl.u32 %v821, 16
      %v1013 = vrot.slane %v1011, 1
      %v1014 = vshll.u32 %v821, 16
      %v1016 = vrot.slane %v1014, 2
      %v1017 = vor.u32 %v1013, %v1016
      %v1019 = vshrl.u32 %v974, 16
      %v1021 = vrot.slane %v1019, 1
      %v1022 = vshll.u32 %v974, 16
      %v1024 = vrot.slane %v1022, 2
      %v1025 = vor.u32 %v1021, %v1024
      %v1026 = vsel %vm992, %v1017, %v1025
      %v1028 = vshrl.u32 %v822, 16
      %v1030 = vrot.slane %v1028, 1
      %v1031 = vshll.u32 %v822, 16
      %v1033 = vrot.slane %v1031, 2
      %v1034 = vor.u32 %v1030, %v1033
      %v1036 = vshrl.u32 %v975, 16
      %v1038 = vrot.slane %v1036, 1
      %v1039 = vshll.u32 %v975, 16
      %v1041 = vrot.slane %v1039, 2
      %v1042 = vor.u32 %v1038, %v1041
      %v1043 = vsel %vm992, %v1034, %v1042
      %v1045 = vshrl.u32 %v823, 16
      %v1047 = vrot.slane %v1045, 1
      %v1048 = vshll.u32 %v823, 16
      %v1050 = vrot.slane %v1048, 2
      %v1051 = vor.u32 %v1047, %v1050
      %v1053 = vshrl.u32 %v976, 16
      %v1055 = vrot.slane %v1053, 1
      %v1056 = vshll.u32 %v976, 16
      %v1058 = vrot.slane %v1056, 2
      %v1059 = vor.u32 %v1055, %v1058
      %v1060 = vsel %vm992, %v1051, %v1059
      %v1062 = vshrl.u32 %v824, 16
      %v1064 = vrot.slane %v1062, 1
      %v1065 = vshll.u32 %v824, 16
      %v1067 = vrot.slane %v1065, 2
      %v1068 = vor.u32 %v1064, %v1067
      %v1070 = vshrl.u32 %v977, 16
      %v1072 = vrot.slane %v1070, 1
      %v1073 = vshll.u32 %v977, 16
      %v1075 = vrot.slane %v1073, 2
      %v1076 = vor.u32 %v1072, %v1075
      %v1077 = vsel %vm992, %v1068, %v1076
      %v1079 = vshrl.u32 %v825, 16
      %v1081 = vrot.slane %v1079, 1
      %v1082 = vshll.u32 %v825, 16
      %v1084 = vrot.slane %v1082, 2
      %v1085 = vor.u32 %v1081, %v1084
      %v1087 = vshrl.u32 %v978, 16
      %v1089 = vrot.slane %v1087, 1
      %v1090 = vshll.u32 %v978, 16
      %v1092 = vrot.slane %v1090, 2
      %v1093 = vor.u32 %v1089, %v1092
      %v1094 = vsel %vm992, %v1085, %v1093
      %v1096 = vshrl.u32 %v826, 16
      %v1098 = vrot.slane %v1096, 1
      %v1099 = vshll.u32 %v826, 16
      %v1101 = vrot.slane %v1099, 2
      %v1102 = vor.u32 %v1098, %v1101
      %v1104 = vshrl.u32 %v979, 16
      %v1106 = vrot.slane %v1104, 1
      %v1107 = vshll.u32 %v979, 16
      %v1109 = vrot.slane %v1107, 2
      %v1110 = vor.u32 %v1106, %v1109
      %v1111 = vsel %vm992, %v1102, %v1110
      %v1113 = vshrl.u32 %v827, 16
      %v1115 = vrot.slane %v1113, 1
      %v1116 = vshll.u32 %v827, 16
      %v1118 = vrot.slane %v1116, 2
      %v1119 = vor.u32 %v1115, %v1118
      %v1121 = vshrl.u32 %v980, 16
      %v1123 = vrot.slane %v1121, 1
      %v1124 = vshll.u32 %v980, 16
      %v1126 = vrot.slane %v1124, 2
      %v1127 = vor.u32 %v1123, %v1126
      %v1128 = vsel %vm992, %v1119, %v1127
      %v1130 = vshrl.u32 %v828, 16
      %v1132 = vrot.slane %v1130, 1
      %v1133 = vshll.u32 %v828, 16
      %v1135 = vrot.slane %v1133, 2
      %v1136 = vor.u32 %v1132, %v1135
      %v1138 = vshrl.u32 %v981, 16
      %v1140 = vrot.slane %v1138, 1
      %v1141 = vshll.u32 %v981, 16
      %v1143 = vrot.slane %v1141, 2
      %v1144 = vor.u32 %v1140, %v1143
      %v1145 = vsel %vm992, %v1136, %v1144
      %v1147 = vshrl.u32 %v829, 16
      %v1149 = vrot.slane %v1147, 1
      %v1150 = vshll.u32 %v829, 16
      %v1152 = vrot.slane %v1150, 2
      %v1153 = vor.u32 %v1149, %v1152
      %v1155 = vshrl.u32 %v982, 16
      %v1157 = vrot.slane %v1155, 1
      %v1158 = vshll.u32 %v982, 16
      %v1160 = vrot.slane %v1158, 2
      %v1161 = vor.u32 %v1157, %v1160
      %v1162 = vsel %vm992, %v1153, %v1161
      %v1164 = vshrl.u32 %v830, 16
      %v1166 = vrot.slane %v1164, 1
      %v1167 = vshll.u32 %v830, 16
      %v1169 = vrot.slane %v1167, 2
      %v1170 = vor.u32 %v1166, %v1169
      %v1172 = vshrl.u32 %v983, 16
      %v1174 = vrot.slane %v1172, 1
      %v1175 = vshll.u32 %v983, 16
      %v1177 = vrot.slane %v1175, 2
      %v1178 = vor.u32 %v1174, %v1177
      %v1179 = vsel %vm992, %v1170, %v1178
      %v1181 = vshrl.u32 %v831, 16
      %v1183 = vrot.slane %v1181, 1
      %v1184 = vshll.u32 %v831, 16
      %v1186 = vrot.slane %v1184, 2
      %v1187 = vor.u32 %v1183, %v1186
      %v1189 = vshrl.u32 %v984, 16
      %v1191 = vrot.slane %v1189, 1
      %v1192 = vshll.u32 %v984, 16
      %v1194 = vrot.slane %v1192, 2
      %v1195 = vor.u32 %v1191, %v1194
      %v1196 = vsel %vm992, %v1187, %v1195
      %v1198 = vshrl.u32 %v832, 16
      %v1200 = vrot.slane %v1198, 1
      %v1201 = vshll.u32 %v832, 16
      %v1203 = vrot.slane %v1201, 2
      %v1204 = vor.u32 %v1200, %v1203
      %v1206 = vshrl.u32 %v985, 16
      %v1208 = vrot.slane %v1206, 1
      %v1209 = vshll.u32 %v985, 16
      %v1211 = vrot.slane %v1209, 2
      %v1212 = vor.u32 %v1208, %v1211
      %v1213 = vsel %vm992, %v1204, %v1212
      %v1215 = vshrl.u32 %v833, 16
      %v1217 = vrot.slane %v1215, 1
      %v1218 = vshll.u32 %v833, 16
      %v1220 = vrot.slane %v1218, 2
      %v1221 = vor.u32 %v1217, %v1220
      %v1223 = vshrl.u32 %v986, 16
      %v1225 = vrot.slane %v1223, 1
      %v1226 = vshll.u32 %v986, 16
      %v1228 = vrot.slane %v1226, 2
      %v1229 = vor.u32 %v1225, %v1228
      %v1230 = vsel %vm992, %v1221, %v1229
      %v1232 = vshrl.u32 %v834, 16
      %v1234 = vrot.slane %v1232, 1
      %v1235 = vshll.u32 %v834, 16
      %v1237 = vrot.slane %v1235, 2
      %v1238 = vor.u32 %v1234, %v1237
      %v1240 = vshrl.u32 %v987, 16
      %v1242 = vrot.slane %v1240, 1
      %v1243 = vshll.u32 %v987, 16
      %v1245 = vrot.slane %v1243, 2
      %v1246 = vor.u32 %v1242, %v1245
      %v1247 = vsel %vm992, %v1238, %v1246
      %v1249 = vshrl.u32 %v835, 16
      %v1251 = vrot.slane %v1249, 1
      %v1252 = vshll.u32 %v835, 16
      %v1254 = vrot.slane %v1252, 2
      %v1255 = vor.u32 %v1251, %v1254
      %v1257 = vshrl.u32 %v988, 16
      %v1259 = vrot.slane %v1257, 1
      %v1260 = vshll.u32 %v988, 16
      %v1262 = vrot.slane %v1260, 2
      %v1263 = vor.u32 %v1259, %v1262
      %v1264 = vsel %vm992, %v1255, %v1263
      %v1266 = vshrl.u32 %v836, 16
      %v1268 = vrot.slane %v1266, 1
      %v1269 = vshll.u32 %v836, 16
      %v1271 = vrot.slane %v1269, 2
      %v1272 = vor.u32 %v1268, %v1271
      %v1274 = vshrl.u32 %v989, 16
      %v1276 = vrot.slane %v1274, 1
      %v1277 = vshll.u32 %v989, 16
      %v1279 = vrot.slane %v1277, 2
      %v1280 = vor.u32 %v1276, %v1279
      %v1281 = vsel %vm992, %v1272, %v1280
      %v1283 = vshrl.u32 %v837, 16
      %v1285 = vrot.slane %v1283, 1
      %v1286 = vshll.u32 %v837, 16
      %v1288 = vrot.slane %v1286, 2
      %v1289 = vor.u32 %v1285, %v1288
      %v1291 = vshrl.u32 %v990, 16
      %v1293 = vrot.slane %v1291, 1
      %v1294 = vshll.u32 %v990, 16
      %v1296 = vrot.slane %v1294, 2
      %v1297 = vor.u32 %v1293, %v1296
      %v1298 = vsel %vm992, %v1289, %v1297
      %v1300 = vshrl.u32 %v838, 16
      %v1302 = vrot.slane %v1300, 1
      %v1303 = vshll.u32 %v838, 16
      %v1305 = vrot.slane %v1303, 2
      %v1306 = vor.u32 %v1302, %v1305
      %v1308 = vshrl.u32 %v991, 16
      %v1310 = vrot.slane %v1308, 1
      %v1311 = vshll.u32 %v991, 16
      %v1313 = vrot.slane %v1311, 2
      %v1314 = vor.u32 %v1310, %v1313
      %v1315 = vsel %vm992, %v1306, %v1314
      %1316 = vrot.lane.b32.xlu0 %v1009, 12
      %v1317 = vpop.permute.xlu0 %1316
      %1318 = vrot.lane.b32.xlu0 %v1026, 12
      %v1319 = vpop.permute.xlu0 %1318
      %1320 = vrot.lane.b32.xlu0 %v1043, 12
      %v1321 = vpop.permute.xlu0 %1320
      %1322 = vrot.lane.b32.xlu0 %v1060, 12
      %v1323 = vpop.permute.xlu0 %1322
      %1324 = vrot.lane.b32.xlu0 %v1077, 12
      %v1325 = vpop.permute.xlu0 %1324
      %1326 = vrot.lane.b32.xlu0 %v1094, 12
      %v1327 = vpop.permute.xlu0 %1326
      %1328 = vrot.lane.b32.xlu0 %v1111, 12
      %v1329 = vpop.permute.xlu0 %1328
      %1330 = vrot.lane.b32.xlu0 %v1128, 12
      %v1331 = vpop.permute.xlu0 %1330
      %1332 = vrot.lane.b32.xlu0 %v1145, 12
      %v1333 = vpop.permute.xlu0 %1332
      %1334 = vrot.lane.b32.xlu0 %v1162, 12
      %v1335 = vpop.permute.xlu0 %1334
      %1336 = vrot.lane.b32.xlu0 %v1179, 12
      %v1337 = vpop.permute.xlu0 %1336
      %1338 = vrot.lane.b32.xlu0 %v1196, 12
      %v1339 = vpop.permute.xlu0 %1338
      %1340 = vrot.lane.b32.xlu0 %v1213, 12
      %v1341 = vpop.permute.xlu0 %1340
      %1342 = vrot.lane.b32.xlu0 %v1230, 12
      %v1343 = vpop.permute.xlu0 %1342
      %1344 = vrot.lane.b32.xlu0 %v1247, 12
      %v1345 = vpop.permute.xlu0 %1344
      %1346 = vrot.lane.b32.xlu0 %v1264, 12
      %v1347 = vpop.permute.xlu0 %1346
      %1348 = vrot.lane.b32.xlu0 %v1281, 12
      %v1349 = vpop.permute.xlu0 %1348
      %1350 = vrot.lane.b32.xlu0 %v1298, 12
      %v1351 = vpop.permute.xlu0 %1350
      %1352 = vrot.lane.b32.xlu0 %v1315, 12
      %v1353 = vpop.permute.xlu0 %1352
      %vm1354 = vcmask 31744
      %v1356 = vsel %vm1354, %v439, %v745
      %v1358 = vsel %vm1354, %v440, %v747
      %v1360 = vsel %vm1354, %v441, %v749
      %v1362 = vsel %vm1354, %v442, %v751
      %v1364 = vsel %vm1354, %v443, %v753
      %v1366 = vsel %vm1354, %v444, %v755
      %v1368 = vsel %vm1354, %v445, %v757
      %v1370 = vsel %vm1354, %v446, %v759
      %v1372 = vsel %vm1354, %v447, %v761
      %v1374 = vsel %vm1354, %v448, %v763
      %v1376 = vsel %vm1354, %v449, %v765
      %v1378 = vsel %vm1354, %v450, %v767
      %v1380 = vsel %vm1354, %v451, %v769
      %v1382 = vsel %vm1354, %v452, %v771
      %v1384 = vsel %vm1354, %v453, %v773
      %v1386 = vsel %vm1354, %v454, %v775
      %v1388 = vsel %vm1354, %v455, %v777
      %v1390 = vsel %vm1354, %v456, %v779
      %v1392 = vsel %vm1354, %v457, %v781
      %vm1393 = vcmask 64512
      %v1395 = vsel %vm1393, %v1356, %v898
      %v1397 = vsel %vm1393, %v1358, %v900
      %v1399 = vsel %vm1393, %v1360, %v902
      %v1401 = vsel %vm1393, %v1362, %v904
      %v1403 = vsel %vm1393, %v1364, %v906
      %v1405 = vsel %vm1393, %v1366, %v908
      %v1407 = vsel %vm1393, %v1368, %v910
      %v1409 = vsel %vm1393, %v1370, %v912
      %v1411 = vsel %vm1393, %v1372, %v914
      %v1413 = vsel %vm1393, %v1374, %v916
      %v1415 = vsel %vm1393, %v1376, %v918
      %v1417 = vsel %vm1393, %v1378, %v920
      %v1419 = vsel %vm1393, %v1380, %v922
      %v1421 = vsel %vm1393, %v1382, %v924
      %v1423 = vsel %vm1393, %v1384, %v926
      %v1425 = vsel %vm1393, %v1386, %v928
      %v1427 = vsel %vm1393, %v1388, %v930
      %v1429 = vsel %vm1393, %v1390, %v932
      %v1431 = vsel %vm1393, %v1392, %v934
      %vm1432 = vcmask 97280
      %v1434 = vsel %vm1432, %v1395, %v1317
      %v1436 = vsel %vm1432, %v1397, %v1319
      %v1438 = vsel %vm1432, %v1399, %v1321
      %v1440 = vsel %vm1432, %v1401, %v1323
      %v1442 = vsel %vm1432, %v1403, %v1325
      %v1444 = vsel %vm1432, %v1405, %v1327
      %v1446 = vsel %vm1432, %v1407, %v1329
      %v1448 = vsel %vm1432, %v1409, %v1331
      %v1450 = vsel %vm1432, %v1411, %v1333
      %v1452 = vsel %vm1432, %v1413, %v1335
      %v1454 = vsel %vm1432, %v1415, %v1337
      %v1456 = vsel %vm1432, %v1417, %v1339
      %v1458 = vsel %vm1432, %v1419, %v1341
      %v1460 = vsel %vm1432, %v1421, %v1343
      %v1462 = vsel %vm1432, %v1423, %v1345
      %v1464 = vsel %vm1432, %v1425, %v1347
      %v1466 = vsel %vm1432, %v1427, %v1349
      %v1468 = vsel %vm1432, %v1429, %v1351
      %v1470 = vsel %vm1432, %v1431, %v1353
      %v1471 = vld [vmem:[%s1] sm:$0xf]
      %v1472 = vld [vmem:[%s1 + $0x4] sm:$0xf]
      %s1473 = scalar_lea.vmem %s1, 8
      %v1474 = vld [vmem:[%s1473] sm:$0xf]
      %v1475 = vld [vmem:[%s1473 + $0x4] sm:$0xf]
      %v1478 = vunpack.c.l.b16 %v1474
      %v1479 = vunpack.c.l.b16 %v1475
      %v1480 = vpack.c.b16 %v1479, %v1478
      %vm1482 = vcmask 130048
      %v1483 = vsel %vm1482, %v1436, 0
      %v1485 = vsel %vm1482, %v1438, 0
      %v1487 = vsel %vm1482, %v1440, 0
      %v1489 = vsel %vm1482, %v1442, 0
      %v1491 = vsel %vm1482, %v1444, 0
      %v1493 = vsel %vm1482, %v1446, 0
      %v1495 = vsel %vm1482, %v1448, 0
      %v1497 = vsel %vm1482, %v1450, 0
      %v1499 = vsel %vm1482, %v1452, 0
      %v1501 = vsel %vm1482, %v1454, 0
      %v1503 = vsel %vm1482, %v1456, 0
      %v1505 = vsel %vm1482, %v1458, 0
      %v1507 = vsel %vm1482, %v1460, 0
      %v1509 = vsel %vm1482, %v1462, 0
      %v1511 = vsel %vm1482, %v1464, 0
      %v1513 = vsel %vm1482, %v1466, 0
      %1515 = vmatpush.bf16.msra.mxu0 0
      %1516 = vmatpush.bf16.msra.mxu0 0
      %1517 = vmatpush.bf16.msra.mxu0 0
      %1518 = vmatpush.bf16.msra.mxu0 0
      %1519 = vmatpush.bf16.msra.mxu0 0
      %1520 = vmatpush.bf16.msra.mxu0 0
      %1521 = vmatpush.bf16.msra.mxu0 0
      %1522 = vmatpush.bf16.msra.mxu0 %v1480
      %1523 = vmatmul.bf16.gmra.mxu0 %v1483
      %v1524 = vpop.f32.mrf.mxu0
      %v1525 = vadd.f32 0.0, %v1524
      %v1526 = vpop.f32.mrf.mxu0
      %v1527 = vadd.f32 0.0, %v1526
      %1528 = vmatmul.bf16.gmra.mxu0 %v1485
      %v1529 = vpop.f32.mrf.mxu0
      %v1530 = vadd.f32 0.0, %v1529
      %v1531 = vpop.f32.mrf.mxu0
      %v1532 = vadd.f32 0.0, %v1531
      %1533 = vmatmul.bf16.gmra.mxu0 %v1487
      %v1534 = vpop.f32.mrf.mxu0
      %v1535 = vadd.f32 0.0, %v1534
      %v1536 = vpop.f32.mrf.mxu0
      %v1537 = vadd.f32 0.0, %v1536
      %1538 = vmatmul.bf16.gmra.mxu0 %v1489
      %v1539 = vpop.f32.mrf.mxu0
      %v1540 = vadd.f32 0.0, %v1539
      %v1541 = vpop.f32.mrf.mxu0
      %v1542 = vadd.f32 0.0, %v1541
      %1543 = vmatmul.bf16.gmra.mxu0 %v1491
      %v1544 = vpop.f32.mrf.mxu0
      %v1545 = vadd.f32 0.0, %v1544
      %v1546 = vpop.f32.mrf.mxu0
      %v1547 = vadd.f32 0.0, %v1546
      %1548 = vmatmul.bf16.gmra.mxu0 %v1493
      %v1549 = vpop.f32.mrf.mxu0
      %v1550 = vadd.f32 0.0, %v1549
      %v1551 = vpop.f32.mrf.mxu0
      %v1552 = vadd.f32 0.0, %v1551
      %1553 = vmatmul.bf16.gmra.mxu0 %v1495
      %v1554 = vpop.f32.mrf.mxu0
      %v1555 = vadd.f32 0.0, %v1554
      %v1556 = vpop.f32.mrf.mxu0
      %v1557 = vadd.f32 0.0, %v1556
      %1558 = vmatmul.bf16.gmra.mxu0 %v1497
      %v1559 = vpop.f32.mrf.mxu0
      %v1560 = vadd.f32 0.0, %v1559
      %v1561 = vpop.f32.mrf.mxu0
      %v1562 = vadd.f32 0.0, %v1561
      %1563 = vmatmul.bf16.gmra.mxu0 %v1499
      %v1564 = vpop.f32.mrf.mxu0
      %v1565 = vadd.f32 0.0, %v1564
      %v1566 = vpop.f32.mrf.mxu0
      %v1567 = vadd.f32 0.0, %v1566
      %1568 = vmatmul.bf16.gmra.mxu0 %v1501
      %v1569 = vpop.f32.mrf.mxu0
      %v1570 = vadd.f32 0.0, %v1569
      %v1571 = vpop.f32.mrf.mxu0
      %v1572 = vadd.f32 0.0, %v1571
      %1573 = vmatmul.bf16.gmra.mxu0 %v1503
      %v1574 = vpop.f32.mrf.mxu0
      %v1575 = vadd.f32 0.0, %v1574
      %v1576 = vpop.f32.mrf.mxu0
      %v1577 = vadd.f32 0.0, %v1576
      %1578 = vmatmul.bf16.gmra.mxu0 %v1505
      %v1579 = vpop.f32.mrf.mxu0
      %v1580 = vadd.f32 0.0, %v1579
      %v1581 = vpop.f32.mrf.mxu0
      %v1582 = vadd.f32 0.0, %v1581
      %1583 = vmatmul.bf16.gmra.mxu0 %v1507
      %v1584 = vpop.f32.mrf.mxu0
      %v1585 = vadd.f32 0.0, %v1584
      %v1586 = vpop.f32.mrf.mxu0
      %v1587 = vadd.f32 0.0, %v1586
      %1588 = vmatmul.bf16.gmra.mxu0 %v1509
      %v1589 = vpop.f32.mrf.mxu0
      %v1590 = vadd.f32 0.0, %v1589
      %v1591 = vpop.f32.mrf.mxu0
      %v1592 = vadd.f32 0.0, %v1591
      %1593 = vmatmul.bf16.gmra.mxu0 %v1511
      %v1594 = vpop.f32.mrf.mxu0
      %v1595 = vadd.f32 0.0, %v1594
      %v1596 = vpop.f32.mrf.mxu0
      %v1597 = vadd.f32 0.0, %v1596
      %1598 = vmatmul.bf16.gmra.mxu0 %v1513
      %v1599 = vpop.f32.mrf.mxu0
      %v1600 = vadd.f32 0.0, %v1599
      %v1601 = vpop.f32.mrf.mxu0
      %v1602 = vadd.f32 0.0, %v1601
      %1603 = vdwg.mxu0
      %v1606 = vunpack.c.l.b16 %v1471
      %v1607 = vunpack.c.l.b16 %v1472
      %v1608 = vpack.c.b16 %v1607, %v1606
      %v1610 = vsel %vm1482, %v1434, 0
      %1612 = vmatpush.bf16.msra.mxu0 0
      %1613 = vmatpush.bf16.msra.mxu0 0
      %1614 = vmatpush.bf16.msra.mxu0 0
      %1615 = vmatpush.bf16.msra.mxu0 0
      %1616 = vmatpush.bf16.msra.mxu0 0
      %1617 = vmatpush.bf16.msra.mxu0 0
      %1618 = vmatpush.bf16.msra.mxu0 0
      %1619 = vmatpush.bf16.msra.mxu0 %v1608
      %1620 = vmatmul.bf16.gmra.mxu0 %v1610
      %v1621 = vpop.f32.mrf.mxu0
      %v1622 = vadd.f32 %v1525, %v1621
      %v1623 = vpop.f32.mrf.mxu0
      %v1624 = vadd.f32 %v1527, %v1623
      %1625 = vmatmul.bf16.gmra.mxu0 %v1483
      %v1626 = vpop.f32.mrf.mxu0
      %v1627 = vadd.f32 %v1530, %v1626
      %v1628 = vpop.f32.mrf.mxu0
      %v1629 = vadd.f32 %v1532, %v1628
      %1630 = vmatmul.bf16.gmra.mxu0 %v1485
      %v1631 = vpop.f32.mrf.mxu0
      %v1632 = vadd.f32 %v1535, %v1631
      %v1633 = vpop.f32.mrf.mxu0
      %v1634 = vadd.f32 %v1537, %v1633
      %1635 = vmatmul.bf16.gmra.mxu0 %v1487
      %v1636 = vpop.f32.mrf.mxu0
      %v1637 = vadd.f32 %v1540, %v1636
      %v1638 = vpop.f32.mrf.mxu0
      %v1639 = vadd.f32 %v1542, %v1638
      %1640 = vmatmul.bf16.gmra.mxu0 %v1489
      %v1641 = vpop.f32.mrf.mxu0
      %v1642 = vadd.f32 %v1545, %v1641
      %v1643 = vpop.f32.mrf.mxu0
      %v1644 = vadd.f32 %v1547, %v1643
      %1645 = vmatmul.bf16.gmra.mxu0 %v1491
      %v1646 = vpop.f32.mrf.mxu0
      %v1647 = vadd.f32 %v1550, %v1646
      %v1648 = vpop.f32.mrf.mxu0
      %v1649 = vadd.f32 %v1552, %v1648
      %1650 = vmatmul.bf16.gmra.mxu0 %v1493
      %v1651 = vpop.f32.mrf.mxu0
      %v1652 = vadd.f32 %v1555, %v1651
      %v1653 = vpop.f32.mrf.mxu0
      %v1654 = vadd.f32 %v1557, %v1653
      %1655 = vmatmul.bf16.gmra.mxu0 %v1495
      %v1656 = vpop.f32.mrf.mxu0
      %v1657 = vadd.f32 %v1560, %v1656
      %v1658 = vpop.f32.mrf.mxu0
      %v1659 = vadd.f32 %v1562, %v1658
      %1660 = vmatmul.bf16.gmra.mxu0 %v1497
      %v1661 = vpop.f32.mrf.mxu0
      %v1662 = vadd.f32 %v1565, %v1661
      %v1663 = vpop.f32.mrf.mxu0
      %v1664 = vadd.f32 %v1567, %v1663
      %1665 = vmatmul.bf16.gmra.mxu0 %v1499
      %v1666 = vpop.f32.mrf.mxu0
      %v1667 = vadd.f32 %v1570, %v1666
      %v1668 = vpop.f32.mrf.mxu0
      %v1669 = vadd.f32 %v1572, %v1668
      %1670 = vmatmul.bf16.gmra.mxu0 %v1501
      %v1671 = vpop.f32.mrf.mxu0
      %v1672 = vadd.f32 %v1575, %v1671
      %v1673 = vpop.f32.mrf.mxu0
      %v1674 = vadd.f32 %v1577, %v1673
      %1675 = vmatmul.bf16.gmra.mxu0 %v1503
      %v1676 = vpop.f32.mrf.mxu0
      %v1677 = vadd.f32 %v1580, %v1676
      %v1678 = vpop.f32.mrf.mxu0
      %v1679 = vadd.f32 %v1582, %v1678
      %1680 = vmatmul.bf16.gmra.mxu0 %v1505
      %v1681 = vpop.f32.mrf.mxu0
      %v1682 = vadd.f32 %v1585, %v1681
      %v1683 = vpop.f32.mrf.mxu0
      %v1684 = vadd.f32 %v1587, %v1683
      %1685 = vmatmul.bf16.gmra.mxu0 %v1507
      %v1686 = vpop.f32.mrf.mxu0
      %v1687 = vadd.f32 %v1590, %v1686
      %v1688 = vpop.f32.mrf.mxu0
      %v1689 = vadd.f32 %v1592, %v1688
      %1690 = vmatmul.bf16.gmra.mxu0 %v1509
      %v1691 = vpop.f32.mrf.mxu0
      %v1692 = vadd.f32 %v1595, %v1691
      %v1693 = vpop.f32.mrf.mxu0
      %v1694 = vadd.f32 %v1597, %v1693
      %1695 = vmatmul.bf16.gmra.mxu0 %v1511
      %v1696 = vpop.f32.mrf.mxu0
      %v1697 = vadd.f32 %v1600, %v1696
      %v1698 = vpop.f32.mrf.mxu0
      %v1699 = vadd.f32 %v1602, %v1698
      %1700 = vdwg.mxu0
      %s1701 = scalar_lea.vmem %s1, 16
      %v1702 = vld [vmem:[%s1701] sm:$0xf]
      %v1703 = vld [vmem:[%s1701 + $0x4] sm:$0xf]
      %v1706 = vunpack.c.l.b16 %v1702
      %v1707 = vunpack.c.l.b16 %v1703
      %v1708 = vpack.c.b16 %v1707, %v1706
      %v1710 = vsel %vm1482, %v1468, 0
      %1712 = vmatpush.bf16.msra.mxu0 0
      %1713 = vmatpush.bf16.msra.mxu0 0
      %1714 = vmatpush.bf16.msra.mxu0 0
      %1715 = vmatpush.bf16.msra.mxu0 0
      %1716 = vmatpush.bf16.msra.mxu0 0
      %1717 = vmatpush.bf16.msra.mxu0 0
      %1718 = vmatpush.bf16.msra.mxu0 0
      %1719 = vmatpush.bf16.msra.mxu0 %v1708
      %1720 = vmatmul.bf16.gmra.mxu0 %v1485
      %v1721 = vpop.f32.mrf.mxu0
      %v1722 = vadd.f32 0.0, %v1721
      %v1723 = vpop.f32.mrf.mxu0
      %v1724 = vadd.f32 0.0, %v1723
      %1725 = vmatmul.bf16.gmra.mxu0 %v1487
      %v1726 = vpop.f32.mrf.mxu0
      %v1727 = vadd.f32 0.0, %v1726
      %v1728 = vpop.f32.mrf.mxu0
      %v1729 = vadd.f32 0.0, %v1728
      %1730 = vmatmul.bf16.gmra.mxu0 %v1489
      %v1731 = vpop.f32.mrf.mxu0
      %v1732 = vadd.f32 0.0, %v1731
      %v1733 = vpop.f32.mrf.mxu0
      %v1734 = vadd.f32 0.0, %v1733
      %1735 = vmatmul.bf16.gmra.mxu0 %v1491
      %v1736 = vpop.f32.mrf.mxu0
      %v1737 = vadd.f32 0.0, %v1736
      %v1738 = vpop.f32.mrf.mxu0
      %v1739 = vadd.f32 0.0, %v1738
      %1740 = vmatmul.bf16.gmra.mxu0 %v1493
      %v1741 = vpop.f32.mrf.mxu0
      %v1742 = vadd.f32 0.0, %v1741
      %v1743 = vpop.f32.mrf.mxu0
      %v1744 = vadd.f32 0.0, %v1743
      %1745 = vmatmul.bf16.gmra.mxu0 %v1495
      %v1746 = vpop.f32.mrf.mxu0
      %v1747 = vadd.f32 0.0, %v1746
      %v1748 = vpop.f32.mrf.mxu0
      %v1749 = vadd.f32 0.0, %v1748
      %1750 = vmatmul.bf16.gmra.mxu0 %v1497
      %v1751 = vpop.f32.mrf.mxu0
      %v1752 = vadd.f32 0.0, %v1751
      %v1753 = vpop.f32.mrf.mxu0
      %v1754 = vadd.f32 0.0, %v1753
      %1755 = vmatmul.bf16.gmra.mxu0 %v1499
      %v1756 = vpop.f32.mrf.mxu0
      %v1757 = vadd.f32 0.0, %v1756
      %v1758 = vpop.f32.mrf.mxu0
      %v1759 = vadd.f32 0.0, %v1758
      %1760 = vmatmul.bf16.gmra.mxu0 %v1501
      %v1761 = vpop.f32.mrf.mxu0
      %v1762 = vadd.f32 0.0, %v1761
      %v1763 = vpop.f32.mrf.mxu0
      %v1764 = vadd.f32 0.0, %v1763
      %1765 = vmatmul.bf16.gmra.mxu0 %v1503
      %v1766 = vpop.f32.mrf.mxu0
      %v1767 = vadd.f32 0.0, %v1766
      %v1768 = vpop.f32.mrf.mxu0
      %v1769 = vadd.f32 0.0, %v1768
      %1770 = vmatmul.bf16.gmra.mxu0 %v1505
      %v1771 = vpop.f32.mrf.mxu0
      %v1772 = vadd.f32 0.0, %v1771
      %v1773 = vpop.f32.mrf.mxu0
      %v1774 = vadd.f32 0.0, %v1773
      %1775 = vmatmul.bf16.gmra.mxu0 %v1507
      %v1776 = vpop.f32.mrf.mxu0
      %v1777 = vadd.f32 0.0, %v1776
      %v1778 = vpop.f32.mrf.mxu0
      %v1779 = vadd.f32 0.0, %v1778
      %1780 = vmatmul.bf16.gmra.mxu0 %v1509
      %v1781 = vpop.f32.mrf.mxu0
      %v1782 = vadd.f32 0.0, %v1781
      %v1783 = vpop.f32.mrf.mxu0
      %v1784 = vadd.f32 0.0, %v1783
      %1785 = vmatmul.bf16.gmra.mxu0 %v1511
      %v1786 = vpop.f32.mrf.mxu0
      %v1787 = vadd.f32 0.0, %v1786
      %v1788 = vpop.f32.mrf.mxu0
      %v1789 = vadd.f32 0.0, %v1788
      %1790 = vmatmul.bf16.gmra.mxu0 %v1513
      %v1791 = vpop.f32.mrf.mxu0
      %v1792 = vadd.f32 0.0, %v1791
      %v1793 = vpop.f32.mrf.mxu0
      %v1794 = vadd.f32 0.0, %v1793
      %1795 = vmatmul.bf16.gmra.mxu0 %v1710
      %v1796 = vpop.f32.mrf.mxu0
      %v1797 = vadd.f32 0.0, %v1796
      %v1798 = vpop.f32.mrf.mxu0
      %v1799 = vadd.f32 0.0, %v1798
      %1800 = vdwg.mxu0
      %v1801 = vadd.f32 %v1622, %v1722
      %v1802 = vadd.f32 %v1624, %v1724
      %v1803 = vadd.f32 %v1627, %v1727
      %v1804 = vadd.f32 %v1629, %v1729
      %v1805 = vadd.f32 %v1632, %v1732
      %v1806 = vadd.f32 %v1634, %v1734
      %v1807 = vadd.f32 %v1637, %v1737
      %v1808 = vadd.f32 %v1639, %v1739
      %v1809 = vadd.f32 %v1642, %v1742
      %v1810 = vadd.f32 %v1644, %v1744
      %v1811 = vadd.f32 %v1647, %v1747
      %v1812 = vadd.f32 %v1649, %v1749
      %v1813 = vadd.f32 %v1652, %v1752
      %v1814 = vadd.f32 %v1654, %v1754
      %v1815 = vadd.f32 %v1657, %v1757
      %v1816 = vadd.f32 %v1659, %v1759
      %v1817 = vadd.f32 %v1662, %v1762
      %v1818 = vadd.f32 %v1664, %v1764
      %v1819 = vadd.f32 %v1667, %v1767
      %v1820 = vadd.f32 %v1669, %v1769
      %v1821 = vadd.f32 %v1672, %v1772
      %v1822 = vadd.f32 %v1674, %v1774
      %v1823 = vadd.f32 %v1677, %v1777
      %v1824 = vadd.f32 %v1679, %v1779
      %v1825 = vadd.f32 %v1682, %v1782
      %v1826 = vadd.f32 %v1684, %v1784
      %v1827 = vadd.f32 %v1687, %v1787
      %v1828 = vadd.f32 %v1689, %v1789
      %v1829 = vadd.f32 %v1692, %v1792
      %v1830 = vadd.f32 %v1694, %v1794
      %v1831 = vadd.f32 %v1697, %v1797
      %v1832 = vadd.f32 %v1699, %v1799
      %s1833 = scalar_lea.vmem %s1, 24
      %v1834 = vld [vmem:[%s1833] sm:$0xf]
      %v1835 = vld [vmem:[%s1833 + $0x4] sm:$0xf]
      %v1838 = vunpack.c.l.b16 %v1834
      %v1839 = vunpack.c.l.b16 %v1835
      %v1840 = vpack.c.b16 %v1839, %v1838
      %v1842 = vsel %vm1482, %v1470, 0
      %1844 = vmatpush.bf16.msra.mxu0 0
      %1845 = vmatpush.bf16.msra.mxu0 0
      %1846 = vmatpush.bf16.msra.mxu0 0
      %1847 = vmatpush.bf16.msra.mxu0 0
      %1848 = vmatpush.bf16.msra.mxu0 0
      %1849 = vmatpush.bf16.msra.mxu0 0
      %1850 = vmatpush.bf16.msra.mxu0 0
      %1851 = vmatpush.bf16.msra.mxu0 %v1840
      %1852 = vmatmul.bf16.gmra.mxu0 %v1487
      %v1853 = vpop.f32.mrf.mxu0
      %v1854 = vadd.f32 0.0, %v1853
      %v1855 = vpop.f32.mrf.mxu0
      %v1856 = vadd.f32 0.0, %v1855
      %1857 = vmatmul.bf16.gmra.mxu0 %v1489
      %v1858 = vpop.f32.mrf.mxu0
      %v1859 = vadd.f32 0.0, %v1858
      %v1860 = vpop.f32.mrf.mxu0
      %v1861 = vadd.f32 0.0, %v1860
      %1862 = vmatmul.bf16.gmra.mxu0 %v1491
      %v1863 = vpop.f32.mrf.mxu0
      %v1864 = vadd.f32 0.0, %v1863
      %v1865 = vpop.f32.mrf.mxu0
      %v1866 = vadd.f32 0.0, %v1865
      %1867 = vmatmul.bf16.gmra.mxu0 %v1493
      %v1868 = vpop.f32.mrf.mxu0
      %v1869 = vadd.f32 0.0, %v1868
      %v1870 = vpop.f32.mrf.mxu0
      %v1871 = vadd.f32 0.0, %v1870
      %1872 = vmatmul.bf16.gmra.mxu0 %v1495
      %v1873 = vpop.f32.mrf.mxu0
      %v1874 = vadd.f32 0.0, %v1873
      %v1875 = vpop.f32.mrf.mxu0
      %v1876 = vadd.f32 0.0, %v1875
      %1877 = vmatmul.bf16.gmra.mxu0 %v1497
      %v1878 = vpop.f32.mrf.mxu0
      %v1879 = vadd.f32 0.0, %v1878
      %v1880 = vpop.f32.mrf.mxu0
      %v1881 = vadd.f32 0.0, %v1880
      %1882 = vmatmul.bf16.gmra.mxu0 %v1499
      %v1883 = vpop.f32.mrf.mxu0
      %v1884 = vadd.f32 0.0, %v1883
      %v1885 = vpop.f32.mrf.mxu0
      %v1886 = vadd.f32 0.0, %v1885
      %1887 = vmatmul.bf16.gmra.mxu0 %v1501
      %v1888 = vpop.f32.mrf.mxu0
      %v1889 = vadd.f32 0.0, %v1888
      %v1890 = vpop.f32.mrf.mxu0
      %v1891 = vadd.f32 0.0, %v1890
      %1892 = vmatmul.bf16.gmra.mxu0 %v1503
      %v1893 = vpop.f32.mrf.mxu0
      %v1894 = vadd.f32 0.0, %v1893
      %v1895 = vpop.f32.mrf.mxu0
      %v1896 = vadd.f32 0.0, %v1895
      %1897 = vmatmul.bf16.gmra.mxu0 %v1505
      %v1898 = vpop.f32.mrf.mxu0
      %v1899 = vadd.f32 0.0, %v1898
      %v1900 = vpop.f32.mrf.mxu0
      %v1901 = vadd.f32 0.0, %v1900
      %1902 = vmatmul.bf16.gmra.mxu0 %v1507
      %v1903 = vpop.f32.mrf.mxu0
      %v1904 = vadd.f32 0.0, %v1903
      %v1905 = vpop.f32.mrf.mxu0
      %v1906 = vadd.f32 0.0, %v1905
      %1907 = vmatmul.bf16.gmra.mxu0 %v1509
      %v1908 = vpop.f32.mrf.mxu0
      %v1909 = vadd.f32 0.0, %v1908
      %v1910 = vpop.f32.mrf.mxu0
      %v1911 = vadd.f32 0.0, %v1910
      %1912 = vmatmul.bf16.gmra.mxu0 %v1511
      %v1913 = vpop.f32.mrf.mxu0
      %v1914 = vadd.f32 0.0, %v1913
      %v1915 = vpop.f32.mrf.mxu0
      %v1916 = vadd.f32 0.0, %v1915
      %1917 = vmatmul.bf16.gmra.mxu0 %v1513
      %v1918 = vpop.f32.mrf.mxu0
      %v1919 = vadd.f32 0.0, %v1918
      %v1920 = vpop.f32.mrf.mxu0
      %v1921 = vadd.f32 0.0, %v1920
      %1922 = vmatmul.bf16.gmra.mxu0 %v1710
      %v1923 = vpop.f32.mrf.mxu0
      %v1924 = vadd.f32 0.0, %v1923
      %v1925 = vpop.f32.mrf.mxu0
      %v1926 = vadd.f32 0.0, %v1925
      %1927 = vmatmul.bf16.gmra.mxu0 %v1842
      %v1928 = vpop.f32.mrf.mxu0
      %v1929 = vadd.f32 0.0, %v1928
      %v1930 = vpop.f32.mrf.mxu0
      %v1931 = vadd.f32 0.0, %v1930
      %1932 = vdwg.mxu0
      %v1933 = vadd.f32 %v1801, %v1854
      %v1934 = vadd.f32 %v1802, %v1856
      %v1935 = vadd.f32 %v1803, %v1859
      %v1936 = vadd.f32 %v1804, %v1861
      %v1937 = vadd.f32 %v1805, %v1864
      %v1938 = vadd.f32 %v1806, %v1866
      %v1939 = vadd.f32 %v1807, %v1869
      %v1940 = vadd.f32 %v1808, %v1871
      %v1941 = vadd.f32 %v1809, %v1874
      %v1942 = vadd.f32 %v1810, %v1876
      %v1943 = vadd.f32 %v1811, %v1879
      %v1944 = vadd.f32 %v1812, %v1881
      %v1945 = vadd.f32 %v1813, %v1884
      %v1946 = vadd.f32 %v1814, %v1886
      %v1947 = vadd.f32 %v1815, %v1889
      %v1948 = vadd.f32 %v1816, %v1891
      %v1949 = vadd.f32 %v1817, %v1894
      %v1950 = vadd.f32 %v1818, %v1896
      %v1951 = vadd.f32 %v1819, %v1899
      %v1952 = vadd.f32 %v1820, %v1901
      %v1953 = vadd.f32 %v1821, %v1904
      %v1954 = vadd.f32 %v1822, %v1906
      %v1955 = vadd.f32 %v1823, %v1909
      %v1956 = vadd.f32 %v1824, %v1911
      %v1957 = vadd.f32 %v1825, %v1914
      %v1958 = vadd.f32 %v1826, %v1916
      %v1959 = vadd.f32 %v1827, %v1919
      %v1960 = vadd.f32 %v1828, %v1921
      %v1961 = vadd.f32 %v1829, %v1924
      %v1962 = vadd.f32 %v1830, %v1926
      %v1963 = vadd.f32 %v1831, %v1929
      %v1964 = vadd.f32 %v1832, %v1931
      %v1965 = vpack.c.bf16 %v1933, %v1933
      %v1966 = vpack.c.bf16 %v1934, %v1934
      %v1967 = vpack.c.bf16 %v1935, %v1935
      %v1968 = vpack.c.bf16 %v1936, %v1936
      %v1969 = vpack.c.bf16 %v1937, %v1937
      %v1970 = vpack.c.bf16 %v1938, %v1938
      %v1971 = vpack.c.bf16 %v1939, %v1939
      %v1972 = vpack.c.bf16 %v1940, %v1940
      %v1973 = vpack.c.bf16 %v1941, %v1941
      %v1974 = vpack.c.bf16 %v1942, %v1942
      %v1975 = vpack.c.bf16 %v1943, %v1943
      %v1976 = vpack.c.bf16 %v1944, %v1944
      %v1977 = vpack.c.bf16 %v1945, %v1945
      %v1978 = vpack.c.bf16 %v1946, %v1946
      %v1979 = vpack.c.bf16 %v1947, %v1947
      %v1980 = vpack.c.bf16 %v1948, %v1948
      %v1981 = vpack.c.bf16 %v1949, %v1949
      %v1982 = vpack.c.bf16 %v1950, %v1950
      %v1983 = vpack.c.bf16 %v1951, %v1951
      %v1984 = vpack.c.bf16 %v1952, %v1952
      %v1985 = vpack.c.bf16 %v1953, %v1953
      %v1986 = vpack.c.bf16 %v1954, %v1954
      %v1987 = vpack.c.bf16 %v1955, %v1955
      %v1988 = vpack.c.bf16 %v1956, %v1956
      %v1989 = vpack.c.bf16 %v1957, %v1957
      %v1990 = vpack.c.bf16 %v1958, %v1958
      %v1991 = vpack.c.bf16 %v1959, %v1959
      %v1992 = vpack.c.bf16 %v1960, %v1960
      %v1993 = vpack.c.bf16 %v1961, %v1961
      %v1994 = vpack.c.bf16 %v1962, %v1962
      %v1995 = vpack.c.bf16 %v1963, %v1963
      %v1996 = vpack.c.bf16 %v1964, %v1964
      %1997 = vst [vmem:[%s250] sm:$0xf] %v1965
      %1998 = vst [vmem:[%s250 + $0x4] sm:$0xf] %v1966
      %1999 = vst [vmem:[%s250 + $0x8] sm:$0xf] %v1967
      %2000 = vst [vmem:[%s250 + $0xc] sm:$0xf] %v1968
      %2001 = vst [vmem:[%s250 + $0x10] sm:$0xf] %v1969
      %2002 = vst [vmem:[%s250 + $0x14] sm:$0xf] %v1970
      %2003 = vst [vmem:[%s250 + $0x18] sm:$0xf] %v1971
      %2004 = vst [vmem:[%s250 + $0x1c] sm:$0xf] %v1972
      %2005 = vst [vmem:[%s250 + $0x20] sm:$0xf] %v1973
      %2006 = vst [vmem:[%s250 + $0x24] sm:$0xf] %v1974
      %2007 = vst [vmem:[%s250 + $0x28] sm:$0xf] %v1975
      %2008 = vst [vmem:[%s250 + $0x2c] sm:$0xf] %v1976
      %2009 = vst [vmem:[%s250 + $0x30] sm:$0xf] %v1977
      %2010 = vst [vmem:[%s250 + $0x34] sm:$0xf] %v1978
      %2011 = vst [vmem:[%s250 + $0x38] sm:$0xf] %v1979
      %2012 = vst [vmem:[%s250 + $0x3c] sm:$0xf] %v1980
      %2013 = vst [vmem:[%s250 + $0x40] sm:$0xf] %v1981
      %2014 = vst [vmem:[%s250 + $0x44] sm:$0xf] %v1982
      %2015 = vst [vmem:[%s250 + $0x48] sm:$0xf] %v1983
      %2016 = vst [vmem:[%s250 + $0x4c] sm:$0xf] %v1984
      %2017 = vst [vmem:[%s250 + $0x50] sm:$0xf] %v1985
      %2018 = vst [vmem:[%s250 + $0x54] sm:$0xf] %v1986
      %2019 = vst [vmem:[%s250 + $0x58] sm:$0xf] %v1987
      %2020 = vst [vmem:[%s250 + $0x5c] sm:$0xf] %v1988
      %2021 = vst [vmem:[%s250 + $0x60] sm:$0xf] %v1989
      %2022 = vst [vmem:[%s250 + $0x64] sm:$0xf] %v1990
      %2023 = vst [vmem:[%s250 + $0x68] sm:$0xf] %v1991
      %2024 = vst [vmem:[%s250 + $0x6c] sm:$0xf] %v1992
      %2025 = vst [vmem:[%s250 + $0x70] sm:$0xf] %v1993
      %2026 = vst [vmem:[%s250 + $0x74] sm:$0xf] %v1994
      %2027 = vst [vmem:[%s250 + $0x78] sm:$0xf] %v1995
      %2028 = vst [vmem:[%s250 + $0x7c] sm:$0xf] %v1996
      %v2029 = vadd.f32 %v1933, %v1934
      %v2030 = vadd.f32 %v2029, %v1935
      %v2031 = vadd.f32 %v2030, %v1936
      %v2032 = vadd.f32 %v2031, %v1937
      %v2033 = vadd.f32 %v2032, %v1938
      %v2034 = vadd.f32 %v2033, %v1939
      %v2035 = vadd.f32 %v2034, %v1940
      %v2036 = vadd.f32 %v2035, %v1941
      %v2037 = vadd.f32 %v2036, %v1942
      %v2038 = vadd.f32 %v2037, %v1943
      %v2039 = vadd.f32 %v2038, %v1944
      %v2040 = vadd.f32 %v2039, %v1945
      %v2041 = vadd.f32 %v2040, %v1946
      %v2042 = vadd.f32 %v2041, %v1947
      %v2043 = vadd.f32 %v2042, %v1948
      %v2044 = vadd.f32 %v2043, %v1949
      %v2045 = vadd.f32 %v2044, %v1950
      %v2046 = vadd.f32 %v2045, %v1951
      %v2047 = vadd.f32 %v2046, %v1952
      %v2048 = vadd.f32 %v2047, %v1953
      %v2049 = vadd.f32 %v2048, %v1954
      %v2050 = vadd.f32 %v2049, %v1955
      %v2051 = vadd.f32 %v2050, %v1956
      %v2052 = vadd.f32 %v2051, %v1957
      %v2053 = vadd.f32 %v2052, %v1958
      %v2054 = vadd.f32 %v2053, %v1959
      %v2055 = vadd.f32 %v2054, %v1960
      %v2056 = vadd.f32 %v2055, %v1961
      %v2057 = vadd.f32 %v2056, %v1962
      %v2058 = vadd.f32 %v2057, %v1963
      %v2059 = vadd.f32 %v2058, %v1964
      %2060 = vst [vmem:[%s259] sm:$0xff] %v2059
      %v2061 = vmul.f32 %v1933, %v1933
      %v2062 = vmul.f32 %v1934, %v1934
      %v2063 = vmul.f32 %v1935, %v1935
      %v2064 = vmul.f32 %v1936, %v1936
      %v2065 = vmul.f32 %v1937, %v1937
      %v2066 = vmul.f32 %v1938, %v1938
      %v2067 = vmul.f32 %v1939, %v1939
      %v2068 = vmul.f32 %v1940, %v1940
      %v2069 = vmul.f32 %v1941, %v1941
      %v2070 = vmul.f32 %v1942, %v1942
      %v2071 = vmul.f32 %v1943, %v1943
      %v2072 = vmul.f32 %v1944, %v1944
      %v2073 = vmul.f32 %v1945, %v1945
      %v2074 = vmul.f32 %v1946, %v1946
      %v2075 = vmul.f32 %v1947, %v1947
      %v2076 = vmul.f32 %v1948, %v1948
      %v2077 = vmul.f32 %v1949, %v1949
      %v2078 = vmul.f32 %v1950, %v1950
      %v2079 = vmul.f32 %v1951, %v1951
      %v2080 = vmul.f32 %v1952, %v1952
      %v2081 = vmul.f32 %v1953, %v1953
      %v2082 = vmul.f32 %v1954, %v1954
      %v2083 = vmul.f32 %v1955, %v1955
      %v2084 = vmul.f32 %v1956, %v1956
      %v2085 = vmul.f32 %v1957, %v1957
      %v2086 = vmul.f32 %v1958, %v1958
      %v2087 = vmul.f32 %v1959, %v1959
      %v2088 = vmul.f32 %v1960, %v1960
      %v2089 = vmul.f32 %v1961, %v1961
      %v2090 = vmul.f32 %v1962, %v1962
      %v2091 = vmul.f32 %v1963, %v1963
      %v2092 = vmul.f32 %v1964, %v1964
      %v2093 = vadd.f32 %v2061, %v2062
      %v2094 = vadd.f32 %v2093, %v2063
      %v2095 = vadd.f32 %v2094, %v2064
      %v2096 = vadd.f32 %v2095, %v2065
      %v2097 = vadd.f32 %v2096, %v2066
      %v2098 = vadd.f32 %v2097, %v2067
      %v2099 = vadd.f32 %v2098, %v2068
      %v2100 = vadd.f32 %v2099, %v2069
      %v2101 = vadd.f32 %v2100, %v2070
      %v2102 = vadd.f32 %v2101, %v2071
      %v2103 = vadd.f32 %v2102, %v2072
      %v2104 = vadd.f32 %v2103, %v2073
      %v2105 = vadd.f32 %v2104, %v2074
      %v2106 = vadd.f32 %v2105, %v2075
      %v2107 = vadd.f32 %v2106, %v2076
      %v2108 = vadd.f32 %v2107, %v2077
      %v2109 = vadd.f32 %v2108, %v2078
      %v2110 = vadd.f32 %v2109, %v2079
      %v2111 = vadd.f32 %v2110, %v2080
      %v2112 = vadd.f32 %v2111, %v2081
      %v2113 = vadd.f32 %v2112, %v2082
      %v2114 = vadd.f32 %v2113, %v2083
      %v2115 = vadd.f32 %v2114, %v2084
      %v2116 = vadd.f32 %v2115, %v2085
      %v2117 = vadd.f32 %v2116, %v2086
      %v2118 = vadd.f32 %v2117, %v2087
      %v2119 = vadd.f32 %v2118, %v2088
      %v2120 = vadd.f32 %v2119, %v2089
      %v2121 = vadd.f32 %v2120, %v2090
      %v2122 = vadd.f32 %v2121, %v2091
      %v2123 = vadd.f32 %v2122, %v2092
      %2124 = vst [vmem:[%s266] sm:$0xff] %v2123
      %s2125 = sadd.s32 %s20, %s21
      %s2126 = smul.u32 32, %s2125
      %p2127 = scmp.lt.s32.totalorder %s2126, 63
      %s2128 = scalar_select %p2127, %s2126, 63
      %s2129 = smul.addr %s2128, 4
      %s2130 = scalar_lea.vmem %s2, %s2129
      %p2131 = scmp.lt.s32.totalorder %s20, 1
      %s2132 = scalar_select %p2131, %s20, 1
      %p2133 = scmp.lt.s32.totalorder %s21, 0
      %s2134 = scalar_select %p2133, %s21, 0
      %s2135 = sadd.s32 %s2134, %s2132
      %s2136 = smul.addr %s2135, 8
      %s2137 = scalar_lea.vmem %s3, %s2136
      %p2138 = scmp.lt.s32.totalorder %s20, 1
      %s2139 = scalar_select %p2138, %s20, 1
      %p2140 = scmp.lt.s32.totalorder %s21, 0
      %s2141 = scalar_select %p2140, %s21, 0
      %s2142 = sadd.s32 %s2141, %s2139
      %s2143 = smul.addr %s2142, 8
      %s2144 = scalar_lea.vmem %s4, %s2143
      // Predicated region
      $region29: #{unet_up_forward.2} parent=27 // pred_check
        %p2145 = pneg %p97
      $region30: #{unet_up_forward.2} parent=27 // pred_check_branch
        %2147 = sbr.rel (%p2145) target = $region32
      $region31: #{unet_up_forward.2} parent=27 // pred_region
        %s2148 = sadd.s32 %s20, %s21
        %s2149 = smul.u32 32, %s2148
      $region32: #{unet_up_forward.2} parent=27 // pred_fallthru
        _
      // Predicated region
      $region33: #{unet_up_forward.2} parent=27 // pred_check
        %p2150 = pneg %p125
      $region34: #{unet_up_forward.2} parent=27 // pred_check_branch
        %2152 = sbr.rel (%p2150) target = $region36
      $region35: #{unet_up_forward.2} parent=27 // pred_region
        _
      $region36: #{unet_up_forward.2} parent=27 // pred_fallthru
        _
      // Predicated region
      $region37: #{unet_up_forward.2} parent=27 // pred_check
        %p2153 = pneg %p153
      $region38: #{unet_up_forward.2} parent=27 // pred_check_branch
        %2155 = sbr.rel (%p2153) target = $region40
      $region39: #{unet_up_forward.2} parent=27 // pred_region
        _
      $region40: #{unet_up_forward.2} parent=27 // pred_fallthru
        _
    $region28: #{unet_up_forward.2} parent=5 // pred_fallthru
      _
    %p2156 = scmp.le.s32.totalorder 2, %s11
    // Predicated region
    $region41: #{unet_up_forward.2} parent=5 // pred_check
      %p2157 = pneg %p2156
    $region42: #{unet_up_forward.2} parent=5 // pred_check_branch
      %2159 = sbr.rel (%p2157) target = $region44
    $region43: #{unet_up_forward.2} parent=5 // pred_region
      %s2160 = ssub.s32 %s11, 2
      // Predicated region
      $region45: #{unet_up_forward.2} parent=43 // pred_check
        %p2161 = pneg %p103
      $region46: #{unet_up_forward.2} parent=43 // pred_check_branch
        %2163 = sbr.rel (%p2161) target = $region48
      $region47: #{unet_up_forward.2} parent=43 // pred_region
        %s2164 = sadd.s32 %s22, %s23
        %s2165 = smul.u32 32, %s2164
        %p2166 = scmp.lt.s32.totalorder %s2165, 63
        %s2167 = scalar_select %p2166, %s2165, 63
        %s2168 = smul.addr %s2167, 4
        %s2169 = scalar_lea.vmem %s2, %s2168
      $region48: #{unet_up_forward.2} parent=43 // pred_fallthru
        _
      // Predicated region
      $region49: #{unet_up_forward.2} parent=43 // pred_check
        %p2170 = pneg %p131
      $region50: #{unet_up_forward.2} parent=43 // pred_check_branch
        %2172 = sbr.rel (%p2170) target = $region52
      $region51: #{unet_up_forward.2} parent=43 // pred_region
        %p2173 = scmp.lt.s32.totalorder %s22, 1
        %s2174 = scalar_select %p2173, %s22, 1
        %p2175 = scmp.lt.s32.totalorder %s23, 0
        %s2176 = scalar_select %p2175, %s23, 0
        %s2177 = sadd.s32 %s2176, %s2174
        %s2178 = smul.addr %s2177, 8
        %s2179 = scalar_lea.vmem %s3, %s2178
      $region52: #{unet_up_forward.2} parent=43 // pred_fallthru
        _
      // Predicated region
      $region53: #{unet_up_forward.2} parent=43 // pred_check
        %p2180 = pneg %p159
      $region54: #{unet_up_forward.2} parent=43 // pred_check_branch
        %2182 = sbr.rel (%p2180) target = $region56
      $region55: #{unet_up_forward.2} parent=43 // pred_region
        %p2183 = scmp.lt.s32.totalorder %s22, 1
        %s2184 = scalar_select %p2183, %s22, 1
        %p2185 = scmp.lt.s32.totalorder %s23, 0
        %s2186 = scalar_select %p2185, %s23, 0
        %s2187 = sadd.s32 %s2186, %s2184
        %s2188 = smul.addr %s2187, 8
        %s2189 = scalar_lea.vmem %s4, %s2188
      $region56: #{unet_up_forward.2} parent=43 // pred_fallthru
        _
    $region44: #{unet_up_forward.2} parent=5 // pred_fallthru
      _
  $region6: #{unet_up_forward.2} parent=0 // loop_footer
    %s15 = sadd.s32 1, %s11
  $region7: #{unet_up_forward.2} parent=0 // loop_footer_branch
    %10 = sbr.rel target = $region3
  $region8: #{unet_up_forward.2} parent=0 // loop_exit
    _

</llo_original>
